<compile_context>
chip_gen: v7x
topology: tpu7x:2x2x1
jax: 0.10.0
libtpu: 0.0.40
codegen_flags: <defaults>
</compile_context>

<pallas_src>
import functools
import math

import jax
import jax.numpy as jnp
from jax import lax
from jax.experimental import pallas as pl
from jax.experimental.pallas import tpu as pltpu


# ---------------------------------------------------------------------------
# Config mirroring the PyTorch module's __init__ arguments.
# ---------------------------------------------------------------------------
class Config:
    emb_dim = 32
    num_heads = 4
    mlp_dim_factor = 4.0          # hidden_dim = 4 * 32 = 128
    use_bias = True
    activation = "silu"           # 'relu' or 'silu'
    dropout_rate = 0.1
    attention_dropout_rate = 0.1


_LN_EPS = 1e-5                    # torch.nn.LayerNorm default


def _round_up(a, b):
    return ((a + b - 1) // b) * b


def _layernorm(x):
    # elementwise_affine=False LayerNorm over the last dim (biased variance).
    mean = jnp.mean(x, axis=-1, keepdims=True)
    var = jnp.mean(jnp.square(x - mean), axis=-1, keepdims=True)
    return (x - mean) * lax.rsqrt(var + _LN_EPS)


def _activation(x, name):
    if name == "relu":
        return jnp.maximum(x, 0.0)
    elif name == "silu":
        return x * jax.nn.sigmoid(x)
    else:
        raise ValueError(f"Unsupported activation: {name}")


# ---------------------------------------------------------------------------
# Kernel 1: ln1 + multi-head self-attention + out-proj + dropout + residual.
# One grid step per batch element (whole sequence resident in VMEM).
# ---------------------------------------------------------------------------
def _attn_kernel(x_ref, wqkv_ref, bqkv_ref, wo_ref, bo_ref, *rest,
                 num_heads, apply_dropout):
    if apply_dropout:
        attn_mask_ref, resid_mask_ref, o_ref = rest
    else:
        (o_ref,) = rest

    x = x_ref[0].astype(jnp.float32)                      # (S, E)
    S, E = x.shape
    hd = E // num_heads
    scale = 1.0 / math.sqrt(hd)

    xn = _layernorm(x)

    # QKV projection on the MXU (f32 accumulation).
    qkv = jnp.dot(xn, wqkv_ref[...], preferred_element_type=jnp.float32)
    qkv = qkv + bqkv_ref[...]                             # (S, 3E)
    q = qkv[:, :E]
    k = qkv[:, E:2 * E]
    v = qkv[:, 2 * E:]

    if apply_dropout:
        attn_masks = attn_mask_ref[0]                     # (H, S, S)

    ctx_cols = []
    for h in range(num_heads):                            # static, small H
        sl = slice(h * hd, (h + 1) * hd)
        qh, kh, vh = q[:, sl], k[:, sl], v[:, sl]
        # q @ k^T without an explicit transpose.
        s = lax.dot_general(qh, kh, (((1,), (1,)), ((), ())),
                            preferred_element_type=jnp.float32) * scale
        s = s - jnp.max(s, axis=-1, keepdims=True)
        p = jnp.exp(s)
        p = p / jnp.sum(p, axis=-1, keepdims=True)
        if apply_dropout:                                 # dropout on attn probs
            p = p * attn_masks[h]
        ctx_cols.append(jnp.dot(p, vh, preferred_element_type=jnp.float32))
    ctx = jnp.concatenate(ctx_cols, axis=-1)              # (S, E)

    attn_out = jnp.dot(ctx, wo_ref[...], preferred_element_type=jnp.float32)
    attn_out = attn_out + bo_ref[...]
    if apply_dropout:                                     # residual dropout
        attn_out = attn_out * resid_mask_ref[0]

    o_ref[0] = (x + attn_out).astype(o_ref.dtype)


def attention_block(x, w_qkv, b_qkv, w_o, b_o, *, num_heads,
                    attn_drop_mask=None, resid_drop_mask=None):
    B, S, E = x.shape
    apply_dropout = attn_drop_mask is not None
    kernel = functools.partial(_attn_kernel, num_heads=num_heads,
                               apply_dropout=apply_dropout)

    in_specs = [
        pl.BlockSpec((1, S, E), lambda b: (b, 0, 0)),           # x (per batch)
        pl.BlockSpec((E, 3 * E), lambda b: (0, 0)),             # W_qkv (resident)
        pl.BlockSpec((1, 3 * E), lambda b: (0, 0)),             # b_qkv
        pl.BlockSpec((E, E), lambda b: (0, 0)),                 # W_o
        pl.BlockSpec((1, E), lambda b: (0, 0)),                 # b_o
    ]
    args = [x, w_qkv, b_qkv, w_o, b_o]
    if apply_dropout:
        in_specs += [
            pl.BlockSpec((1, num_heads, S, S), lambda b: (b, 0, 0, 0)),
            pl.BlockSpec((1, S, E), lambda b: (b, 0, 0)),
        ]
        args += [attn_drop_mask, resid_drop_mask]

    return pl.pallas_call(
        kernel,
        out_shape=jax.ShapeDtypeStruct((B, S, E), x.dtype),
        grid=(B,),
        in_specs=in_specs,
        out_specs=pl.BlockSpec((1, S, E), lambda b: (b, 0, 0)),
        compiler_params=pltpu.CompilerParams(
            dimension_semantics=("parallel",)),
    )(*args)


# ---------------------------------------------------------------------------
# Kernel 2: ln2 + fc1 + activation + dropout + fc2 + dropout + residual,
# tiled over flattened tokens with a large tile (perf feedback).
# ---------------------------------------------------------------------------
def _mlp_kernel(x_ref, w1_ref, b1_ref, w2_ref, b2_ref, *rest,
                activation, apply_dropout):
    if apply_dropout:
        hid_mask_ref, out_mask_ref, o_ref = rest
    else:
        (o_ref,) = rest

    x = x_ref[...].astype(jnp.float32)                    # (tm, E)
    xn = _layernorm(x)

    h = jnp.dot(xn, w1_ref[...], preferred_element_type=jnp.float32)
    h = h + b1_ref[...]                                   # (tm, hidden)
    h = _activation(h, activation)
    if apply_dropout:                                     # MLP-internal dropout
        h = h * hid_mask_ref[...]

    y = jnp.dot(h, w2_ref[...], preferred_element_type=jnp.float32)
    y = y + b2_ref[...]                                   # (tm, E)
    if apply_dropout:                                     # residual dropout
        y = y * out_mask_ref[...]

    o_ref[...] = (x + y).astype(o_ref.dtype)


def mlp_residual_block(x, w1, b1, w2, b2, *, activation,
                       hid_drop_mask=None, out_drop_mask=None, tm=512):
    tokens, E = x.shape
    hidden = w1.shape[1]
    apply_dropout = hid_drop_mask is not None

    # Large token tile: amortizes per-grid-step overhead and fills the MXU
    # M dimension.  Pad the token axis so any token count works; padded rows
    # are zeros (LayerNorm of a zero row is zero with eps, so no NaNs) and
    # are sliced off afterwards.
    tm = min(tm, _round_up(tokens, 8))
    tokens_pad = _round_up(tokens, tm)
    if tokens_pad != tokens:
        pad = tokens_pad - tokens
        x = jnp.pad(x, ((0, pad), (0, 0)))
        if apply_dropout:
            hid_drop_mask = jnp.pad(hid_drop_mask, ((0, pad), (0, 0)))
            out_drop_mask = jnp.pad(out_drop_mask, ((0, pad), (0, 0)))

    kernel = functools.partial(_mlp_kernel, activation=activation,
                               apply_dropout=apply_dropout)

    in_specs = [
        pl.BlockSpec((tm, E), lambda i: (i, 0)),                # x tile
        pl.BlockSpec((E, hidden), lambda i: (0, 0)),            # W1 (resident)
        pl.BlockSpec((1, hidden), lambda i: (0, 0)),            # b1
        pl.BlockSpec((hidden, E), lambda i: (0, 0)),            # W2 (resident)
        pl.BlockSpec((1, E), lambda i: (0, 0)),                 # b2
    ]
    args = [x, w1, b1, w2, b2]
    if apply_dropout:
        in_specs += [pl.BlockSpec((tm, hidden), lambda i: (i, 0)),
                     pl.BlockSpec((tm, E), lambda i: (i, 0))]
        args += [hid_drop_mask, out_drop_mask]

    out = pl.pallas_call(
        kernel,
        out_shape=jax.ShapeDtypeStruct((tokens_pad, E), x.dtype),
        grid=(tokens_pad // tm,),
        in_specs=in_specs,
        out_specs=pl.BlockSpec((tm, E), lambda i: (i, 0)),
        compiler_params=pltpu.CompilerParams(
            dimension_semantics=("parallel",)),
    )(*args)
    return out[:tokens]


# ---------------------------------------------------------------------------
# Full layer wrapper (matches TransformerLayer.forward).
# ---------------------------------------------------------------------------
def transformer_layer(embeddings, params, config, *, dropout_eval,
                      rng=None, pad_mask=None):
    # TODO(synk): pad_mask / attn_mask support not implemented (tests use pad_mask=None).
    assert pad_mask is None, "pad_mask not supported in this kernel"

    B, S, E = embeddings.shape
    H = config.num_heads
    hidden = int(config.mlp_dim_factor * config.emb_dim)
    tokens = B * S

    attn_mask = resid1_mask = hid_mask = resid2_mask = None
    if not dropout_eval:
        # Dropout masks generated with jax.random (portable; avoids the
        # TPU-only prng_seed primitive) and pre-scaled (inverted dropout).
        assert rng is not None
        k1, k2, k3, k4 = jax.random.split(rng, 4)

        def make_mask(key, p, shape):
            keep = 1.0 - float(p)
            m = jax.random.bernoulli(key, keep, shape).astype(jnp.float32)
            return m / keep

        attn_mask = make_mask(k1, config.attention_dropout_rate, (B, H, S, S))
        resid1_mask = make_mask(k2, config.dropout_rate, (B, S, E))
        hid_mask = make_mask(k3, config.dropout_rate, (tokens, hidden))
        resid2_mask = make_mask(k4, config.dropout_rate, (tokens, E))

    # ln1 + MHA + dropout + residual (fused, per-batch grid).
    x_attn = attention_block(
        embeddings, params["w_qkv"], params["b_qkv"],
        params["w_o"], params["b_o"], num_heads=H,
        attn_drop_mask=attn_mask, resid_drop_mask=resid1_mask)

    # ln2 + MLP + dropout + residual (fused, tiled over flattened tokens).
    x2d = x_attn.reshape(tokens, E)
    out2d = mlp_residual_block(
        x2d, params["w1"], params["b1"], params["w2"], params["b2"],
        activation=config.activation,
        hid_drop_mask=hid_mask, out_drop_mask=resid2_mask)
    return out2d.reshape(B, S, E)


# ---------------------------------------------------------------------------
# Pure-JAX reference (eval path) for correctness.
# ---------------------------------------------------------------------------
def transformer_layer_ref(x, params, config):
    B, S, E = x.shape
    H = config.num_heads
    hd = E // H

    def ln(v):
        m = v.mean(-1, keepdims=True)
        var = ((v - m) ** 2).mean(-1, keepdims=True)
        return (v - m) / jnp.sqrt(var + _LN_EPS)

    xn = ln(x)
    qkv = xn @ params["w_qkv"] + params["b_qkv"]
    q, k, v = jnp.split(qkv, 3, axis=-1)

    def heads(t):
        return t.reshape(B, S, H, hd).transpose(0, 2, 1, 3)

    qh, kh, vh = heads(q), heads(k), heads(v)
    s = jnp.einsum("bhqd,bhkd->bhqk", qh, kh) / math.sqrt(hd)
    p = jax.nn.softmax(s, axis=-1)
    ctx = jnp.einsum("bhqk,bhkd->bhqd", p, vh).transpose(0, 2, 1, 3).reshape(B, S, E)
    attn = ctx @ params["w_o"] + params["b_o"]
    x = x + attn

    xn2 = ln(x)
    h = _activation(xn2 @ params["w1"] + params["b1"], config.activation)
    y = h @ params["w2"] + params["b2"]
    return x + y


# ---------------------------------------------------------------------------
# Main: deterministic params/inputs, run once, check vs reference.
# ---------------------------------------------------------------------------
if __name__ == "__main__":
    cfg = Config()
    E = cfg.emb_dim
    H = cfg.num_heads
    hidden = int(cfg.mlp_dim_factor * E)
    B, S = 2, 8

    key = jax.random.PRNGKey(0)
    ks = jax.random.split(key, 10)

    x = jax.random.normal(ks[0], (B, S, E), dtype=jnp.float32)

    def bias(k, n):
        if cfg.use_bias:
            return jax.random.normal(k, (1, n), jnp.float32) * 0.01
        return jnp.zeros((1, n), jnp.float32)

    params = dict(
        w_qkv=jax.random.normal(ks[1], (E, 3 * E), jnp.float32) * 0.05,
        b_qkv=bias(ks[2], 3 * E),
        w_o=jax.random.normal(ks[3], (E, E), jnp.float32) * 0.05,
        b_o=bias(ks[4], E),
        w1=jax.random.normal(ks[5], (E, hidden), jnp.float32) * 0.05,
        b1=bias(ks[6], hidden),
        w2=jax.random.normal(ks[7], (hidden, E), jnp.float32) * 0.05,
        b2=bias(ks[8], E),
    )

    # Inference path (dropout_eval=True): must match the pure-JAX reference.
    out = transformer_layer(x, params, cfg, dropout_eval=True)
    jax.block_until_ready(out)

    ref = transformer_layer_ref(x, params, cfg)
    assert jnp.allclose(out, ref, atol=2e-4, rtol=2e-4), "mismatch vs reference"

    # Training path (stochastic dropout; distribution-only match with torch).
    out_train = transformer_layer(x, params, cfg, dropout_eval=False,
                                  rng=jax.random.PRNGKey(42))
    jax.block_until_ready(out_train)
    assert bool(jnp.all(jnp.isfinite(out_train))), "non-finite training output"

    print("KERNEL_OK")
</pallas_src>

<mosaic_0001>
module attributes {stable_mosaic.version = 11 : i64} {
  func.func @_attn_kernel(%arg0: i32, %arg1: memref<1x8x32xf32, #tpu.memory_space<vmem>>, %arg2: memref<32x96xf32, #tpu.memory_space<vmem>>, %arg3: memref<1x96xf32, #tpu.memory_space<vmem>>, %arg4: memref<32x32xf32, #tpu.memory_space<vmem>>, %arg5: memref<1x32xf32, #tpu.memory_space<vmem>>, %arg6: memref<1x8x32xf32, #tpu.memory_space<vmem>>) attributes {dimension_semantics = [#tpu.dimension_semantics<parallel>], iteration_bounds = array<i64: 2>, scalar_prefetch = 0 : i64, scratch_operands = 0 : i64, tpu.core_type = #tpu.core_type<tc>, window_params = [{transform_indices = @transform_0, window_bounds = array<i64: 1, 8, 32>}, {pipeline_mode = #tpu.pipeline_mode<synchronous>, transform_indices = @transform_1, window_bounds = array<i64: 32, 96>}, {pipeline_mode = #tpu.pipeline_mode<synchronous>, transform_indices = @transform_2, window_bounds = array<i64: 1, 96>}, {pipeline_mode = #tpu.pipeline_mode<synchronous>, transform_indices = @transform_3, window_bounds = array<i64: 32, 32>}, {pipeline_mode = #tpu.pipeline_mode<synchronous>, transform_indices = @transform_4, window_bounds = array<i64: 1, 32>}, {transform_indices = @transform_5, window_bounds = array<i64: 1, 8, 32>}]} {
    %c0 = arith.constant 0 : index
    %c0_0 = arith.constant 0 : index
    %c0_1 = arith.constant 0 : index
    %0 = vector.load %arg1[%c0, %c0_0, %c0_1] : memref<1x8x32xf32, #tpu.memory_space<vmem>>, vector<1x8x32xf32>
    %1 = vector.shape_cast %0 : vector<1x8x32xf32> to vector<8x32xf32>
    %cst = arith.constant dense<0.000000e+00> : vector<8xf32>
    %2 = vector.multi_reduction <add>, %1, %cst [1] : vector<8x32xf32> to vector<8xf32>
    %3 = vector.shape_cast %2 : vector<8xf32> to vector<8x1xf32>
    %cst_2 = arith.constant 3.200000e+01 : f32
    %4 = vector.broadcast %cst_2 : f32 to vector<8x1xf32>
    %5 = arith.divf %3, %4 : vector<8x1xf32>
    %6 = vector.broadcast %5 : vector<8x1xf32> to vector<8x32xf32>
    %7 = arith.subf %1, %6 : vector<8x32xf32>
    %8 = arith.mulf %7, %7 : vector<8x32xf32>
    %cst_3 = arith.constant dense<0.000000e+00> : vector<8xf32>
    %9 = vector.multi_reduction <add>, %8, %cst_3 [1] : vector<8x32xf32> to vector<8xf32>
    %10 = vector.shape_cast %9 : vector<8xf32> to vector<8x1xf32>
    %cst_4 = arith.constant 3.200000e+01 : f32
    %11 = vector.broadcast %cst_4 : f32 to vector<8x1xf32>
    %12 = arith.divf %10, %11 : vector<8x1xf32>
    %13 = vector.broadcast %5 : vector<8x1xf32> to vector<8x32xf32>
    %14 = arith.subf %1, %13 : vector<8x32xf32>
    %cst_5 = arith.constant 9.99999974E-6 : f32
    %15 = vector.broadcast %cst_5 : f32 to vector<8x1xf32>
    %16 = arith.addf %12, %15 : vector<8x1xf32>
    %17 = math.rsqrt %16 : vector<8x1xf32>
    %18 = vector.broadcast %17 : vector<8x1xf32> to vector<8x32xf32>
    %19 = arith.mulf %14, %18 : vector<8x32xf32>
    %c0_6 = arith.constant 0 : index
    %c0_7 = arith.constant 0 : index
    %20 = vector.load %arg2[%c0_6, %c0_7] : memref<32x96xf32, #tpu.memory_space<vmem>>, vector<32x96xf32>
    %cst_8 = arith.constant dense<0.000000e+00> : vector<8x96xf32>
    %21 = tpu.matmul %19, %20, %cst_8 {dimension_numbers = #tpu.dot_dimension_numbers<[1], [0], [0], [1], [0, 0, 1, 1], [], []>} : vector<8x32xf32>, vector<32x96xf32>, vector<8x96xf32> -> vector<8x96xf32>
    %c0_9 = arith.constant 0 : index
    %c0_10 = arith.constant 0 : index
    %22 = vector.load %arg3[%c0_9, %c0_10] : memref<1x96xf32, #tpu.memory_space<vmem>>, vector<1x96xf32>
    %23 = vector.broadcast %22 : vector<1x96xf32> to vector<8x96xf32>
    %24 = arith.addf %21, %23 : vector<8x96xf32>
    %25 = vector.extract_strided_slice %24 {offsets = [0, 0], sizes = [8, 32], strides = [1, 1]} : vector<8x96xf32> to vector<8x32xf32>
    %26 = vector.extract_strided_slice %24 {offsets = [0, 32], sizes = [8, 32], strides = [1, 1]} : vector<8x96xf32> to vector<8x32xf32>
    %27 = vector.extract_strided_slice %24 {offsets = [0, 64], sizes = [8, 32], strides = [1, 1]} : vector<8x96xf32> to vector<8x32xf32>
    %28 = vector.extract_strided_slice %25 {offsets = [0, 0], sizes = [8, 8], strides = [1, 1]} : vector<8x32xf32> to vector<8x8xf32>
    %29 = vector.extract_strided_slice %26 {offsets = [0, 0], sizes = [8, 8], strides = [1, 1]} : vector<8x32xf32> to vector<8x8xf32>
    %30 = vector.extract_strided_slice %27 {offsets = [0, 0], sizes = [8, 8], strides = [1, 1]} : vector<8x32xf32> to vector<8x8xf32>
    %cst_11 = arith.constant dense<0.000000e+00> : vector<8x8xf32>
    %31 = tpu.matmul %28, %29, %cst_11 {dimension_numbers = #tpu.dot_dimension_numbers<[1], [1], [0], [0], [0, 0, 1, 0], [], []>} : vector<8x8xf32>, vector<8x8xf32>, vector<8x8xf32> -> vector<8x8xf32>
    %cst_12 = arith.constant 0.353553385 : f32
    %32 = vector.broadcast %cst_12 : f32 to vector<8x8xf32>
    %33 = arith.mulf %31, %32 : vector<8x8xf32>
    %cst_13 = arith.constant dense<0xFF800000> : vector<8xf32>
    %34 = vector.multi_reduction <maximumf>, %33, %cst_13 [1] : vector<8x8xf32> to vector<8xf32>
    %35 = vector.shape_cast %34 : vector<8xf32> to vector<8x1xf32>
    %36 = vector.broadcast %35 : vector<8x1xf32> to vector<8x8xf32>
    %37 = arith.subf %33, %36 : vector<8x8xf32>
    %38 = math.exp %37 : vector<8x8xf32>
    %cst_14 = arith.constant dense<0.000000e+00> : vector<8xf32>
    %39 = vector.multi_reduction <add>, %38, %cst_14 [1] : vector<8x8xf32> to vector<8xf32>
    %40 = vector.shape_cast %39 : vector<8xf32> to vector<8x1xf32>
    %41 = vector.broadcast %40 : vector<8x1xf32> to vector<8x8xf32>
    %42 = arith.divf %38, %41 : vector<8x8xf32>
    %cst_15 = arith.constant dense<0.000000e+00> : vector<8x8xf32>
    %43 = tpu.matmul %42, %30, %cst_15 {dimension_numbers = #tpu.dot_dimension_numbers<[1], [0], [0], [1], [0, 0, 1, 1], [], []>} : vector<8x8xf32>, vector<8x8xf32>, vector<8x8xf32> -> vector<8x8xf32>
    %44 = vector.extract_strided_slice %25 {offsets = [0, 8], sizes = [8, 8], strides = [1, 1]} : vector<8x32xf32> to vector<8x8xf32>
    %45 = vector.extract_strided_slice %26 {offsets = [0, 8], sizes = [8, 8], strides = [1, 1]} : vector<8x32xf32> to vector<8x8xf32>
    %46 = vector.extract_strided_slice %27 {offsets = [0, 8], sizes = [8, 8], strides = [1, 1]} : vector<8x32xf32> to vector<8x8xf32>
    %cst_16 = arith.constant dense<0.000000e+00> : vector<8x8xf32>
    %47 = tpu.matmul %44, %45, %cst_16 {dimension_numbers = #tpu.dot_dimension_numbers<[1], [1], [0], [0], [0, 0, 1, 0], [], []>} : vector<8x8xf32>, vector<8x8xf32>, vector<8x8xf32> -> vector<8x8xf32>
    %cst_17 = arith.constant 0.353553385 : f32
    %48 = vector.broadcast %cst_17 : f32 to vector<8x8xf32>
    %49 = arith.mulf %47, %48 : vector<8x8xf32>
    %cst_18 = arith.constant dense<0xFF800000> : vector<8xf32>
    %50 = vector.multi_reduction <maximumf>, %49, %cst_18 [1] : vector<8x8xf32> to vector<8xf32>
    %51 = vector.shape_cast %50 : vector<8xf32> to vector<8x1xf32>
    %52 = vector.broadcast %51 : vector<8x1xf32> to vector<8x8xf32>
    %53 = arith.subf %49, %52 : vector<8x8xf32>
    %54 = math.exp %53 : vector<8x8xf32>
    %cst_19 = arith.constant dense<0.000000e+00> : vector<8xf32>
    %55 = vector.multi_reduction <add>, %54, %cst_19 [1] : vector<8x8xf32> to vector<8xf32>
    %56 = vector.shape_cast %55 : vector<8xf32> to vector<8x1xf32>
    %57 = vector.broadcast %56 : vector<8x1xf32> to vector<8x8xf32>
    %58 = arith.divf %54, %57 : vector<8x8xf32>
    %cst_20 = arith.constant dense<0.000000e+00> : vector<8x8xf32>
    %59 = tpu.matmul %58, %46, %cst_20 {dimension_numbers = #tpu.dot_dimension_numbers<[1], [0], [0], [1], [0, 0, 1, 1], [], []>} : vector<8x8xf32>, vector<8x8xf32>, vector<8x8xf32> -> vector<8x8xf32>
    %60 = vector.extract_strided_slice %25 {offsets = [0, 16], sizes = [8, 8], strides = [1, 1]} : vector<8x32xf32> to vector<8x8xf32>
    %61 = vector.extract_strided_slice %26 {offsets = [0, 16], sizes = [8, 8], strides = [1, 1]} : vector<8x32xf32> to vector<8x8xf32>
    %62 = vector.extract_strided_slice %27 {offsets = [0, 16], sizes = [8, 8], strides = [1, 1]} : vector<8x32xf32> to vector<8x8xf32>
    %cst_21 = arith.constant dense<0.000000e+00> : vector<8x8xf32>
    %63 = tpu.matmul %60, %61, %cst_21 {dimension_numbers = #tpu.dot_dimension_numbers<[1], [1], [0], [0], [0, 0, 1, 0], [], []>} : vector<8x8xf32>, vector<8x8xf32>, vector<8x8xf32> -> vector<8x8xf32>
    %cst_22 = arith.constant 0.353553385 : f32
    %64 = vector.broadcast %cst_22 : f32 to vector<8x8xf32>
    %65 = arith.mulf %63, %64 : vector<8x8xf32>
    %cst_23 = arith.constant dense<0xFF800000> : vector<8xf32>
    %66 = vector.multi_reduction <maximumf>, %65, %cst_23 [1] : vector<8x8xf32> to vector<8xf32>
    %67 = vector.shape_cast %66 : vector<8xf32> to vector<8x1xf32>
    %68 = vector.broadcast %67 : vector<8x1xf32> to vector<8x8xf32>
    %69 = arith.subf %65, %68 : vector<8x8xf32>
    %70 = math.exp %69 : vector<8x8xf32>
    %cst_24 = arith.constant dense<0.000000e+00> : vector<8xf32>
    %71 = vector.multi_reduction <add>, %70, %cst_24 [1] : vector<8x8xf32> to vector<8xf32>
    %72 = vector.shape_cast %71 : vector<8xf32> to vector<8x1xf32>
    %73 = vector.broadcast %72 : vector<8x1xf32> to vector<8x8xf32>
    %74 = arith.divf %70, %73 : vector<8x8xf32>
    %cst_25 = arith.constant dense<0.000000e+00> : vector<8x8xf32>
    %75 = tpu.matmul %74, %62, %cst_25 {dimension_numbers = #tpu.dot_dimension_numbers<[1], [0], [0], [1], [0, 0, 1, 1], [], []>} : vector<8x8xf32>, vector<8x8xf32>, vector<8x8xf32> -> vector<8x8xf32>
    %76 = vector.extract_strided_slice %25 {offsets = [0, 24], sizes = [8, 8], strides = [1, 1]} : vector<8x32xf32> to vector<8x8xf32>
    %77 = vector.extract_strided_slice %26 {offsets = [0, 24], sizes = [8, 8], strides = [1, 1]} : vector<8x32xf32> to vector<8x8xf32>
    %78 = vector.extract_strided_slice %27 {offsets = [0, 24], sizes = [8, 8], strides = [1, 1]} : vector<8x32xf32> to vector<8x8xf32>
    %cst_26 = arith.constant dense<0.000000e+00> : vector<8x8xf32>
    %79 = tpu.matmul %76, %77, %cst_26 {dimension_numbers = #tpu.dot_dimension_numbers<[1], [1], [0], [0], [0, 0, 1, 0], [], []>} : vector<8x8xf32>, vector<8x8xf32>, vector<8x8xf32> -> vector<8x8xf32>
    %cst_27 = arith.constant 0.353553385 : f32
    %80 = vector.broadcast %cst_27 : f32 to vector<8x8xf32>
    %81 = arith.mulf %79, %80 : vector<8x8xf32>
    %cst_28 = arith.constant dense<0xFF800000> : vector<8xf32>
    %82 = vector.multi_reduction <maximumf>, %81, %cst_28 [1] : vector<8x8xf32> to vector<8xf32>
    %83 = vector.shape_cast %82 : vector<8xf32> to vector<8x1xf32>
    %84 = vector.broadcast %83 : vector<8x1xf32> to vector<8x8xf32>
    %85 = arith.subf %81, %84 : vector<8x8xf32>
    %86 = math.exp %85 : vector<8x8xf32>
    %cst_29 = arith.constant dense<0.000000e+00> : vector<8xf32>
    %87 = vector.multi_reduction <add>, %86, %cst_29 [1] : vector<8x8xf32> to vector<8xf32>
    %88 = vector.shape_cast %87 : vector<8xf32> to vector<8x1xf32>
    %89 = vector.broadcast %88 : vector<8x1xf32> to vector<8x8xf32>
    %90 = arith.divf %86, %89 : vector<8x8xf32>
    %cst_30 = arith.constant dense<0.000000e+00> : vector<8x8xf32>
    %91 = tpu.matmul %90, %78, %cst_30 {dimension_numbers = #tpu.dot_dimension_numbers<[1], [0], [0], [1], [0, 0, 1, 1], [], []>} : vector<8x8xf32>, vector<8x8xf32>, vector<8x8xf32> -> vector<8x8xf32>
    %92 = tpu.concatenate %43, %59, %75, %91 in 1 : vector<8x8xf32>, vector<8x8xf32>, vector<8x8xf32>, vector<8x8xf32> -> vector<8x32xf32>
    %c0_31 = arith.constant 0 : index
    %c0_32 = arith.constant 0 : index
    %93 = vector.load %arg4[%c0_31, %c0_32] : memref<32x32xf32, #tpu.memory_space<vmem>>, vector<32x32xf32>
    %cst_33 = arith.constant dense<0.000000e+00> : vector<8x32xf32>
    %94 = tpu.matmul %92, %93, %cst_33 {dimension_numbers = #tpu.dot_dimension_numbers<[1], [0], [0], [1], [0, 0, 1, 1], [], []>} : vector<8x32xf32>, vector<32x32xf32>, vector<8x32xf32> -> vector<8x32xf32>
    %c0_34 = arith.constant 0 : index
    %c0_35 = arith.constant 0 : index
    %95 = vector.load %arg5[%c0_34, %c0_35] : memref<1x32xf32, #tpu.memory_space<vmem>>, vector<1x32xf32>
    %96 = vector.broadcast %95 : vector<1x32xf32> to vector<8x32xf32>
    %97 = arith.addf %94, %96 : vector<8x32xf32>
    %98 = arith.addf %1, %97 : vector<8x32xf32>
    %c0_36 = arith.constant 0 : index
    %c0_37 = arith.constant 0 : index
    %c0_38 = arith.constant 0 : index
    %99 = vector.load %arg6[%c0_36, %c0_37, %c0_38] : memref<1x8x32xf32, #tpu.memory_space<vmem>>, vector<1x8x32xf32>
    %100 = vector.shape_cast %99 : vector<1x8x32xf32> to vector<8x32xf32>
    %101 = vector.shape_cast %98 : vector<8x32xf32> to vector<1x8x32xf32>
    tpu.vector_store %arg6[%c0_36, %c0_37, %c0_38], %101 {strides = array<i32>} : memref<1x8x32xf32, #tpu.memory_space<vmem>>, vector<1x8x32xf32>,
    return
  }
  func.func @transform_0(%arg0: i32) -> (i32, i32, i32) {
    %c0_i32 = arith.constant 0 : i32
    %c0_i32_0 = arith.constant 0 : i32
    %c0_i32_1 = arith.constant 0 : i32
    return %arg0, %c0_i32, %c0_i32_0 : i32, i32, i32
  }
  func.func @transform_1(%arg0: i32) -> (i32, i32) {
    %c0_i32 = arith.constant 0 : i32
    %c0_i32_0 = arith.constant 0 : i32
    %c0_i32_1 = arith.constant 0 : i32
    return %c0_i32, %c0_i32_0 : i32, i32
  }
  func.func @transform_2(%arg0: i32) -> (i32, i32) {
    %c0_i32 = arith.constant 0 : i32
    %c0_i32_0 = arith.constant 0 : i32
    %c0_i32_1 = arith.constant 0 : i32
    return %c0_i32, %c0_i32_0 : i32, i32
  }
  func.func @transform_3(%arg0: i32) -> (i32, i32) {
    %c0_i32 = arith.constant 0 : i32
    %c0_i32_0 = arith.constant 0 : i32
    %c0_i32_1 = arith.constant 0 : i32
    return %c0_i32, %c0_i32_0 : i32, i32
  }
  func.func @transform_4(%arg0: i32) -> (i32, i32) {
    %c0_i32 = arith.constant 0 : i32
    %c0_i32_0 = arith.constant 0 : i32
    %c0_i32_1 = arith.constant 0 : i32
    return %c0_i32, %c0_i32_0 : i32, i32
  }
  func.func @transform_5(%arg0: i32) -> (i32, i32, i32) {
    %c0_i32 = arith.constant 0 : i32
    %c0_i32_0 = arith.constant 0 : i32
    %c0_i32_1 = arith.constant 0 : i32
    return %arg0, %c0_i32, %c0_i32_0 : i32, i32, i32
  }
}

</mosaic_0001>

<llo_original>
// kernel: tpu_custom_call.1
$region0: #{tpu_custom_call.1}
  #allocation0 [shape = 'u32[]', space=smem, size = 0x4, offset = 0x4, fixed_abs, tag = 'smem constant byte address 0x4 - core index']
  #allocation1 [shape = 'u32[144,128]{1,0:T(1,128)}', space=vmem, size = 0x12000, scoped, tag = 'internal scratch']
  %s0 = inlined_call_operand.hbm [shape: f32[2,8,32], index: 0, kind: input, shape index: {}]
  %s1 = inlined_call_operand.hbm [shape: f32[32,96], index: 1, kind: input, shape index: {}]
  %s2 = inlined_call_operand.vmem [shape: f32[1,96], index: 2, kind: input, shape index: {}]
  %s3 = inlined_call_operand.hbm [shape: f32[32,32], index: 3, kind: input, shape index: {}]
  %s4 = inlined_call_operand.vmem [shape: f32[1,32], index: 4, kind: input, shape index: {}]
  %s5 = inlined_call_operand.hbm [shape: f32[2,8,32], index: 5, kind: output, shape index: {}]
  %s6 = sld [smem:[#allocation0]]
  $region65: #{tpu_custom_call.1} parent=0
    _
  %s8 = ssub.s32 1, %s6
  %s9 = scalar_select 0, %s8, %s6
  $region1: #{tpu_custom_call.1} parent=0
    #allocation2 [shape = 'u8[8192]{0}', space=vmem, size = 0x2000, scoped, tag = 'input window, operand 0']
    #allocation3 [shape = 's32[2]{0}', space=sflag, size = 0x8, scoped, tag = 'scoped memory for tpu_custom_call.1']
    #allocation4 [shape = 's32[2]{0}', space=sflag, size = 0x8, scoped, tag = 'scoped memory for tpu_custom_call.1']
    #allocation5 [shape = 'u8[16384]{0}', space=vmem, size = 0x4000, scoped, tag = 'input window, operand 1, single buffered']
    #allocation6 [shape = 's32[1]{0}', space=sflag, size = 0x4, scoped, tag = 'scoped memory for tpu_custom_call.1']
    #allocation7 [shape = 'u8[16384]{0}', space=vmem, size = 0x4000, scoped, tag = 'input window, operand 3, single buffered']
    #allocation8 [shape = 'u8[8192]{0}', space=vmem, size = 0x2000, scoped, tag = 'output window, operand 0']
    %10 = vsyncpa [#allocation3], 0
    %s11 = scalar_lea.sflag [#allocation3], 1
    %12 = vsyncpa %s11, 0
    %13 = vsyncpa [#allocation6], 0
    %14 = vsyncpa [#allocation4], 0
    %s15 = scalar_lea.sflag [#allocation4], 1
    %16 = vsyncpa %s15, 0
    loop: start=0, step=1, limit=4
    $region2: #{tpu_custom_call.1} parent=1 // loop_pre_header
      _
    $region3: #{tpu_custom_call.1} parent=1 // loop_header
      %s18 = sphi 0, %s22
      %p19 = scmp.ge.s32.totalorder %s18, 4
      %s28 = sphi 0, %s30
      %s31 = sphi 0, %s28
      %s32 = sphi 0, %s31
      %s48 = sphi 0, %s32
      %s52 = sphi 0, %s52
      %s54 = sphi 0, %s52
      %s55 = sphi 0, %s54
      %s69 = sphi 0, %s55
      %s73 = sphi 0, %s73
      %s75 = sphi 0, %s73
      %s76 = sphi 0, %s75
      %s90 = sphi 0, %s76
      %s94 = sphi 0, %s94
      %s96 = sphi 0, %s94
      %s97 = sphi 0, %s96
      %s111 = sphi 0, %s97
      %s115 = sphi 0, %s115
      %s117 = sphi 0, %s115
      %s118 = sphi 0, %s117
      %s132 = sphi 0, %s118
      %s138 = sphi 0, %s140
      %s141 = sphi 0, %s138
      %s142 = sphi 0, %s141
      %s158 = sphi 0, %s142
    $region4: #{tpu_custom_call.1} parent=1 // loop_header_branch
      %21 = sbr.rel (%p19) target = $region8
    $region5: #{tpu_custom_call.1} parent=1 // loop_body
      %s23 = ssub.s32 %s18, 1
      %s24 = ssub.s32 %s18, 2
      %s25 = sadd.s32 %s18, 1
      %s26 = ssub.s32 %s18, %s25
      %p27 = scmp.eq.s32.totalorder %s26, 0
      %s29 = sadd.s32 %s28, 1
      %s30 = scalar_select %p27, %s28, %s29
      %p33 = pneg %p27
      %p34 = scmp.eq.s32.totalorder %s18, 1
      %p35 = por %p33, %p34
      %p36 = scmp.ne.s32.totalorder %s28, %s31
      %p37 = scmp.eq.s32.totalorder %s18, 0
      %p38 = por %p36, %p37
      %p39 = scmp.ne.s32.totalorder %s28, %s31
      %p40 = scmp.eq.s32.totalorder %s23, 1
      %p41 = por %p39, %p40
      %p42 = scmp.ne.s32.totalorder %s31, %s32
      %p43 = scmp.eq.s32.totalorder %s23, 0
      %p44 = por %p42, %p43
      %p45 = scmp.ne.s32.totalorder %s31, %s32
      %p46 = scmp.eq.s32.totalorder %s24, 1
      %p47 = por %p45, %p46
      %p49 = scmp.ne.s32.totalorder %s32, %s48
      %p50 = scmp.eq.s32.totalorder %s24, 0
      %p51 = por %p49, %p50
      %s53 = sadd.s32 %s52, 1
      %p56 = scmp.eq.s32.totalorder %s18, 1
      %p57 = scmp.ne.s32.totalorder %s52, %s54
      %p58 = scmp.eq.s32.totalorder %s18, 0
      %p59 = por %p57, %p58
      %p60 = scmp.ne.s32.totalorder %s52, %s54
      %p61 = scmp.eq.s32.totalorder %s23, 1
      %p62 = por %p60, %p61
      %p63 = scmp.ne.s32.totalorder %s54, %s55
      %p64 = scmp.eq.s32.totalorder %s23, 0
      %p65 = por %p63, %p64
      %p66 = scmp.ne.s32.totalorder %s54, %s55
      %p67 = scmp.eq.s32.totalorder %s24, 1
      %p68 = por %p66, %p67
      %p70 = scmp.ne.s32.totalorder %s55, %s69
      %p71 = scmp.eq.s32.totalorder %s24, 0
      %p72 = por %p70, %p71
      %s74 = sadd.s32 %s73, 1
      %p77 = scmp.eq.s32.totalorder %s18, 1
      %p78 = scmp.ne.s32.totalorder %s73, %s75
      %p79 = scmp.eq.s32.totalorder %s18, 0
      %p80 = por %p78, %p79
      %p81 = scmp.ne.s32.totalorder %s73, %s75
      %p82 = scmp.eq.s32.totalorder %s23, 1
      %p83 = por %p81, %p82
      %p84 = scmp.ne.s32.totalorder %s75, %s76
      %p85 = scmp.eq.s32.totalorder %s23, 0
      %p86 = por %p84, %p85
      %p87 = scmp.ne.s32.totalorder %s75, %s76
      %p88 = scmp.eq.s32.totalorder %s24, 1
      %p89 = por %p87, %p88
      %p91 = scmp.ne.s32.totalorder %s76, %s90
      %p92 = scmp.eq.s32.totalorder %s24, 0
      %p93 = por %p91, %p92
      %s95 = sadd.s32 %s94, 1
      %p98 = scmp.eq.s32.totalorder %s18, 1
      %p99 = scmp.ne.s32.totalorder %s94, %s96
      %p100 = scmp.eq.s32.totalorder %s18, 0
      %p101 = por %p99, %p100
      %p102 = scmp.ne.s32.totalorder %s94, %s96
      %p103 = scmp.eq.s32.totalorder %s23, 1
      %p104 = por %p102, %p103
      %p105 = scmp.ne.s32.totalorder %s96, %s97
      %p106 = scmp.eq.s32.totalorder %s23, 0
      %p107 = por %p105, %p106
      %p108 = scmp.ne.s32.totalorder %s96, %s97
      %p109 = scmp.eq.s32.totalorder %s24, 1
      %p110 = por %p108, %p109
      %p112 = scmp.ne.s32.totalorder %s97, %s111
      %p113 = scmp.eq.s32.totalorder %s24, 0
      %p114 = por %p112, %p113
      %s116 = sadd.s32 %s115, 1
      %p119 = scmp.eq.s32.totalorder %s18, 1
      %p120 = scmp.ne.s32.totalorder %s115, %s117
      %p121 = scmp.eq.s32.totalorder %s18, 0
      %p122 = por %p120, %p121
      %p123 = scmp.ne.s32.totalorder %s115, %s117
      %p124 = scmp.eq.s32.totalorder %s23, 1
      %p125 = por %p123, %p124
      %p126 = scmp.ne.s32.totalorder %s117, %s118
      %p127 = scmp.eq.s32.totalorder %s23, 0
      %p128 = por %p126, %p127
      %p129 = scmp.ne.s32.totalorder %s117, %s118
      %p130 = scmp.eq.s32.totalorder %s24, 1
      %p131 = por %p129, %p130
      %p133 = scmp.ne.s32.totalorder %s118, %s132
      %p134 = scmp.eq.s32.totalorder %s24, 0
      %p135 = por %p133, %p134
      %s136 = ssub.s32 %s18, %s25
      %p137 = scmp.eq.s32.totalorder %s136, 0
      %s139 = sadd.s32 %s138, 1
      %s140 = scalar_select %p137, %s138, %s139
      %p143 = pneg %p137
      %p144 = scmp.eq.s32.totalorder %s18, 1
      %p145 = por %p143, %p144
      %p146 = scmp.ne.s32.totalorder %s138, %s141
      %p147 = scmp.eq.s32.totalorder %s18, 0
      %p148 = por %p146, %p147
      %p149 = scmp.ne.s32.totalorder %s138, %s141
      %p150 = scmp.eq.s32.totalorder %s23, 1
      %p151 = por %p149, %p150
      %p152 = scmp.ne.s32.totalorder %s141, %s142
      %p153 = scmp.eq.s32.totalorder %s23, 0
      %p154 = por %p152, %p153
      %p155 = scmp.ne.s32.totalorder %s141, %s142
      %p156 = scmp.eq.s32.totalorder %s24, 1
      %p157 = por %p155, %p156
      %p159 = scmp.ne.s32.totalorder %s142, %s158
      %p160 = scmp.eq.s32.totalorder %s24, 0
      %p161 = por %p159, %p160
      %p162 = scmp.le.s32.totalorder 1, %s18
      %p163 = scmp.lt.s32.totalorder %s18, 3
      %p164 = pnand %p162, %p163
      %p165 = pneg %p164
      // Predicated region
      $region9: #{tpu_custom_call.1} parent=5 // pred_check
        _
      $region10: #{tpu_custom_call.1} parent=5 // pred_check_branch
        %167 = sbr.rel (%p164) target = $region12
      $region11: #{tpu_custom_call.1} parent=5 // pred_region
        %s168 = ssub.s32 %s18, 1
        // Predicated region
        $region13: #{tpu_custom_call.1} parent=11 // pred_check
          %p169 = pneg %p65
        $region14: #{tpu_custom_call.1} parent=11 // pred_check_branch
          %171 = sbr.rel (%p169) target = $region16
        $region15: #{tpu_custom_call.1} parent=11 // pred_region
          %s173 = ssub.s32 512, 512
          %174 = vsyncadd [#allocation6], %s173
          %s175 = sshll.u32 [#allocation5], 4
          %s176 = int_to_ptr.vmem [resolvable:$true] %s175
          %181 = dma.hbm_to_vmem [thread:$0]  %s1, 512, %s176, [#allocation6], 128, 128, 8
        $region16: #{tpu_custom_call.1} parent=11 // pred_fallthru
          _
        // Predicated region
        $region17: #{tpu_custom_call.1} parent=11 // pred_check
          %p182 = pneg %p86
        $region18: #{tpu_custom_call.1} parent=11 // pred_check_branch
          %184 = sbr.rel (%p182) target = $region20
        $region19: #{tpu_custom_call.1} parent=11 // pred_region
          _
        $region20: #{tpu_custom_call.1} parent=11 // pred_fallthru
          _
        // Predicated region
        $region21: #{tpu_custom_call.1} parent=11 // pred_check
          %p185 = pneg %p107
        $region22: #{tpu_custom_call.1} parent=11 // pred_check_branch
          %187 = sbr.rel (%p185) target = $region24
        $region23: #{tpu_custom_call.1} parent=11 // pred_region
          %s189 = ssub.s32 512, 512
          %190 = vsyncadd [#allocation6], %s189
          %s191 = sshll.u32 [#allocation7], 4
          %s192 = int_to_ptr.vmem [resolvable:$true] %s191
          %197 = dma.hbm_to_vmem [thread:$0]  %s3, 512, %s192, [#allocation6], 128, 128, 8
        $region24: #{tpu_custom_call.1} parent=11 // pred_fallthru
          _
        // Predicated region
        $region25: #{tpu_custom_call.1} parent=11 // pred_check
          %p198 = pneg %p128
        $region26: #{tpu_custom_call.1} parent=11 // pred_check_branch
          %200 = sbr.rel (%p198) target = $region28
        $region27: #{tpu_custom_call.1} parent=11 // pred_region
          _
        $region28: #{tpu_custom_call.1} parent=11 // pred_fallthru
          _
      $region12: #{tpu_custom_call.1} parent=5 // pred_fallthru
        _
      %p201 = scmp.lt.s32.totalorder %s18, 2
      // Predicated region
      $region29: #{tpu_custom_call.1} parent=5 // pred_check
        %p202 = pneg %p201
      $region30: #{tpu_custom_call.1} parent=5 // pred_check_branch
        %204 = sbr.rel (%p202) target = $region32
      $region31: #{tpu_custom_call.1} parent=5 // pred_region
        // Predicated region
        $region33: #{tpu_custom_call.1} parent=31 // pred_check
          %p205 = pneg %p38
        $region34: #{tpu_custom_call.1} parent=31 // pred_check_branch
          %207 = sbr.rel (%p205) target = $region36
        $region35: #{tpu_custom_call.1} parent=31 // pred_region
          %s208 = sand.u32 %s28, 1
          %s209 = scalar_lea.sflag [#allocation3], %s208
          %s210 = sand.u32 %s28, 1
          %s211 = smul.addr %s210, 8
          %s212 = scalar_lea.vmem [#allocation2], %s211
          %s214 = ssub.s32 128, 128
          %215 = vsyncadd %s209, %s214
          %s216 = smul.addr %s18, 128
          %s217 = scalar_lea.hbm %s0, %s216
          %s219 = sshll.u32 %s212, 4
          %s220 = int_to_ptr.vmem [resolvable:$true] %s219
          %222 = dma.hbm_to_vmem [thread:$0]  %s217, 128, %s220, %s209
        $region36: #{tpu_custom_call.1} parent=31 // pred_fallthru
          _
      $region32: #{tpu_custom_call.1} parent=5 // pred_fallthru
        _
      %p223 = scmp.le.s32.totalorder 1, %s18
      %p224 = scmp.lt.s32.totalorder %s18, 3
      %p225 = pnand %p223, %p224
      %p226 = pneg %p225
      // Predicated region
      $region37: #{tpu_custom_call.1} parent=5 // pred_check
        _
      $region38: #{tpu_custom_call.1} parent=5 // pred_check_branch
        %228 = sbr.rel (%p225) target = $region40
      $region39: #{tpu_custom_call.1} parent=5 // pred_region
        %s229 = ssub.s32 %s18, 1
        %s230 = sand.u32 %s31, 1
        %s231 = scalar_lea.sflag [#allocation3], %s230
        %s232 = sand.u32 %s31, 1
        %s233 = smul.addr %s232, 8
        %s234 = scalar_lea.vmem [#allocation2], %s233
        // Predicated region
        $region41: #{tpu_custom_call.1} parent=39 // pred_check
          %p235 = pneg %p44
        $region42: #{tpu_custom_call.1} parent=39 // pred_check_branch
          %237 = sbr.rel (%p235) target = $region44
        $region43: #{tpu_custom_call.1} parent=39 // pred_region
          %238 = dma.done %s231, 128
        $region44: #{tpu_custom_call.1} parent=39 // pred_fallthru
          _
        // Predicated region
        $region45: #{tpu_custom_call.1} parent=39 // pred_check
          %p239 = pneg %p65
        $region46: #{tpu_custom_call.1} parent=39 // pred_check_branch
          %241 = sbr.rel (%p239) target = $region48
        $region47: #{tpu_custom_call.1} parent=39 // pred_region
          %242 = dma.done [#allocation6], 512
        $region48: #{tpu_custom_call.1} parent=39 // pred_fallthru
          _
        // Predicated region
        $region49: #{tpu_custom_call.1} parent=39 // pred_check
          %p243 = pneg %p107
        $region50: #{tpu_custom_call.1} parent=39 // pred_check_branch
          %245 = sbr.rel (%p243) target = $region52
        $region51: #{tpu_custom_call.1} parent=39 // pred_region
          %246 = dma.done [#allocation6], 512
        $region52: #{tpu_custom_call.1} parent=39 // pred_fallthru
          _
        %s247 = sand.u32 %s31, 1
        %s248 = scalar_lea.sflag [#allocation3], %s247
        %s249 = sand.u32 %s31, 1
        %s250 = smul.addr %s249, 8
        %s251 = scalar_lea.vmem [#allocation2], %s250
        %p252 = pneg %p44
        %p253 = pneg %p41
        %p254 = pneg %p65
        %p255 = pneg %p62
        %p256 = pneg %p86
        %p257 = pneg %p83
        %p258 = pneg %p107
        %p259 = pneg %p104
        %p260 = pneg %p128
        %p261 = pneg %p125
        %p262 = pneg %p154
        %p263 = pneg %p151
        %s264 = sand.u32 %s141, 1
        %s265 = scalar_lea.sflag [#allocation4], %s264
        %s266 = sand.u32 %s141, 1
        %s267 = smul.addr %s266, 8
        %s268 = scalar_lea.vmem [#allocation8], %s267
        %v269 = vld [vmem:[%s234] sm:$0xff]
        %vm270 = vcmask 261120
        %v271 = vsel %vm270, %v269, 0.0
        %272 = vadd.xlane.f32.xlu0 %v271
        %v273 = vpop.xlane.xlu0 %272
        %v274 = vrcp.pop 32.0
        %v275 = vmul.f32 %v273, %v274
        %v276 = vsub.f32 %v269, %v275
        %v277 = vmul.f32 %v276, %v276
        %v278 = vsel %vm270, %v277, 0.0
        %279 = vadd.xlane.f32.xlu0 %v278
        %v280 = vpop.xlane.xlu0 %279
        %v281 = vmul.f32 %v280, %v274
        %v282 = vadd.f32 %v281, 1e-05
        %v283 = vrsqrt.pop %v282
        %v284 = vmul.f32 %v276, %v283
        %v285 = vld [vmem:[#allocation5] sm:$0xff]
        %v286 = vld [vmem:[#allocation5 + $0x8] sm:$0xff]
        %v287 = vld [vmem:[#allocation5 + $0x10] sm:$0xff]
        %v288 = vld [vmem:[#allocation5 + $0x18] sm:$0xff]
        %v289 = vld [vmem:[%s2] sm:$0x1]
        %v291 = vlaneseq
        %v292 = vshrl.u32 %v291, 7
        %v293 = vsub.s32 0, %v292
        %v294 = vrot.slane %v289, %v293
        %v297 = vsel %vm270, %v284, 0
        %299 = vmatprep.subr.mxu0 0.0
        %300 = vmatpush1.msra.mxu0 %v285
        %301 = vmatprep.subr.mxu0 0.0
        %302 = vmatpush1.msra.mxu0 %v286
        %303 = vmatprep.subr.mxu0 0.0
        %304 = vmatpush1.msra.mxu0 %v287
        %305 = vmatprep.subr.mxu0 0.0
        %306 = vmatpush1.msra.mxu0 %v288
        %307 = vmatprep.subr.mxu0 0.0
        %308 = vmatpush1.msra.mxu0 0.0
        %309 = vmatprep.subr.mxu0 0.0
        %310 = vmatpush1.msra.mxu0 0.0
        %311 = vmatprep.subr.mxu0 0.0
        %312 = vmatpush1.msra.mxu0 0.0
        %313 = vmatprep.subr.mxu0 0.0
        %314 = vmatpush1.msra.mxu0 0.0
        %315 = vmatprep.subr.mxu0 0.0
        %316 = vmatpush1.msra.mxu0 0.0
        %317 = vmatprep.subr.mxu0 0.0
        %318 = vmatpush1.msra.mxu0 0.0
        %319 = vmatprep.subr.mxu0 0.0
        %320 = vmatpush1.msra.mxu0 0.0
        %321 = vmatprep.subr.mxu0 0.0
        %322 = vmatpush1.msra.mxu0 0.0
        %323 = vmatprep.subr.mxu0 0.0
        %324 = vmatpush1.msra.mxu0 0.0
        %325 = vmatprep.subr.mxu0 0.0
        %326 = vmatpush1.msra.mxu0 0.0
        %327 = vmatprep.subr.mxu0 0.0
        %328 = vmatpush1.msra.mxu0 0.0
        %329 = vmatprep.subr.mxu0 0.0
        %330 = vmatpush1.msra.mxu0 0.0
        %331 = vmatprep.subr.mxu0 0.0
        %332 = vmatpush1.msra.mxu0 0.0
        %333 = vmatprep.subr.mxu0 0.0
        %334 = vmatpush1.msra.mxu0 0.0
        %335 = vmatprep.subr.mxu0 0.0
        %336 = vmatpush1.msra.mxu0 0.0
        %337 = vmatprep.subr.mxu0 0.0
        %338 = vmatpush1.msra.mxu0 0.0
        %339 = vmatprep.subr.mxu0 0.0
        %340 = vmatpush1.msra.mxu0 0.0
        %341 = vmatprep.subr.mxu0 0.0
        %342 = vmatpush1.msra.mxu0 0.0
        %343 = vmatprep.subr.mxu0 0.0
        %344 = vmatpush1.msra.mxu0 0.0
        %345 = vmatprep.subr.mxu0 0.0
        %346 = vmatpush1.msra.mxu0 0.0
        %347 = vmatprep.subr.mxu0 0.0
        %348 = vmatpush1.msra.mxu0 0.0
        %349 = vmatprep.subr.mxu0 0.0
        %350 = vmatpush1.msra.mxu0 0.0
        %351 = vmatprep.subr.mxu0 0.0
        %352 = vmatpush1.msra.mxu0 0.0
        %353 = vmatprep.subr.mxu0 0.0
        %354 = vmatpush1.msra.mxu0 0.0
        %355 = vmatprep.subr.mxu0 0.0
        %356 = vmatpush1.msra.mxu0 0.0
        %357 = vmatprep.subr.mxu0 0.0
        %358 = vmatpush1.msra.mxu0 0.0
        %359 = vmatprep.subr.mxu0 0.0
        %360 = vmatpush1.msra.mxu0 0.0
        %361 = vmatprep.subr.mxu0 0.0
        %362 = vmatpush1.msra.mxu0 0.0
        %363 = vmatprep.mubr.f32.mxu0 0.0
        %364 = vmatmul.mubr.f32.gmra.mrb[0].mxu0 %v297
        %v365 = vpop.f32.mrb[0].mxu0
        %v366 = vadd.f32 %v294, %v365
        %v367 = vpop.f32.mrb[0].mxu0
        %368 = vdwg.mxu0
        %370 = vrot.lane.b32.xlu0 %v366, 96
        %v371 = vpop.permute.xlu0 %370
        %vm372 = vcmask 64512
        %v373 = vsel %vm372, %v366, 0
        %v375 = vsel %vm372, %v371, 0
        %377 = vmatprep.subr.mxu0 0.0
        %378 = vmatpush1.xpose.msra.mxu0 %v375
        %379 = vmatprep.subr.mxu0 0.0
        %380 = vmatpush1.xpose.msra.mxu0 0.0
        %381 = vmatprep.subr.mxu0 0.0
        %382 = vmatpush1.xpose.msra.mxu0 0.0
        %383 = vmatprep.subr.mxu0 0.0
        %384 = vmatpush1.xpose.msra.mxu0 0.0
        %385 = vmatprep.subr.mxu0 0.0
        %386 = vmatpush1.xpose.msra.mxu0 0.0
        %387 = vmatprep.subr.mxu0 0.0
        %388 = vmatpush1.xpose.msra.mxu0 0.0
        %389 = vmatprep.subr.mxu0 0.0
        %390 = vmatpush1.xpose.msra.mxu0 0.0
        %391 = vmatprep.subr.mxu0 0.0
        %392 = vmatpush1.xpose.msra.mxu0 0.0
        %393 = vmatprep.subr.mxu0 0.0
        %394 = vmatpush1.xpose.msra.mxu0 0.0
        %395 = vmatprep.subr.mxu0 0.0
        %396 = vmatpush1.xpose.msra.mxu0 0.0
        %397 = vmatprep.subr.mxu0 0.0
        %398 = vmatpush1.xpose.msra.mxu0 0.0
        %399 = vmatprep.subr.mxu0 0.0
        %400 = vmatpush1.xpose.msra.mxu0 0.0
        %401 = vmatprep.subr.mxu0 0.0
        %402 = vmatpush1.xpose.msra.mxu0 0.0
        %403 = vmatprep.subr.mxu0 0.0
        %404 = vmatpush1.xpose.msra.mxu0 0.0
        %405 = vmatprep.subr.mxu0 0.0
        %406 = vmatpush1.xpose.msra.mxu0 0.0
        %407 = vmatprep.subr.mxu0 0.0
        %408 = vmatpush1.xpose.msra.mxu0 0.0
        %409 = vmatprep.subr.mxu0 0.0
        %410 = vmatpush1.xpose.msra.mxu0 0.0
        %411 = vmatprep.subr.mxu0 0.0
        %412 = vmatpush1.xpose.msra.mxu0 0.0
        %413 = vmatprep.subr.mxu0 0.0
        %414 = vmatpush1.xpose.msra.mxu0 0.0
        %415 = vmatprep.subr.mxu0 0.0
        %416 = vmatpush1.xpose.msra.mxu0 0.0
        %417 = vmatprep.subr.mxu0 0.0
        %418 = vmatpush1.xpose.msra.mxu0 0.0
        %419 = vmatprep.subr.mxu0 0.0
        %420 = vmatpush1.xpose.msra.mxu0 0.0
        %421 = vmatprep.subr.mxu0 0.0
        %422 = vmatpush1.xpose.msra.mxu0 0.0
        %423 = vmatprep.subr.mxu0 0.0
        %424 = vmatpush1.xpose.msra.mxu0 0.0
        %425 = vmatprep.subr.mxu0 0.0
        %426 = vmatpush1.xpose.msra.mxu0 0.0
        %427 = vmatprep.subr.mxu0 0.0
        %428 = vmatpush1.xpose.msra.mxu0 0.0
        %429 = vmatprep.subr.mxu0 0.0
        %430 = vmatpush1.xpose.msra.mxu0 0.0
        %431 = vmatprep.subr.mxu0 0.0
        %432 = vmatpush1.xpose.msra.mxu0 0.0
        %433 = vmatprep.subr.mxu0 0.0
        %434 = vmatpush1.xpose.msra.mxu0 0.0
        %435 = vmatprep.subr.mxu0 0.0
        %436 = vmatpush1.xpose.msra.mxu0 0.0
        %437 = vmatprep.subr.mxu0 0.0
        %438 = vmatpush1.xpose.msra.mxu0 0.0
        %439 = vmatprep.subr.mxu0 0.0
        %440 = vmatpush1.xpose.msra.mxu0 0.0
        %441 = vmatprep.mubr.f32.mxu0 0.0
        %442 = vmatmul.mubr.f32.gmra.mrb[0].mxu0 %v373
        %v443 = vpop.f32.mrb[0].mxu0
        %v444 = vadd.f32 0.0, %v443
        %v445 = vpop.f32.mrb[0].mxu0
        %446 = vdwg.mxu0
        %v447 = vmul.f32 %v444, 0.35355338
        %v448 = vsel %vm372, %v447, -inf
        %449 = vmax.xlane.f32.xlu0 %v448
        %v450 = vpop.xlane.xlu0 %449
        %v451 = vsub.f32 %v447, %v450
        %v452 = vmul.f32 %v451, 1.442695
        %v453 = vpow.pop %v452
        %v454 = vsel %vm372, %v453, 0.0
        %455 = vadd.xlane.f32.xlu0 %v454
        %v456 = vpop.xlane.xlu0 %455
        %v457 = vrcp.pop %v456
        %v458 = vmul.f32 %v453, %v457
        %459 = vrot.lane.b32.xlu0 %v366, 64
        %v460 = vpop.permute.xlu0 %459
        %v463 = vsel %vm372, %v458, 0
        %465 = vmatprep.subr.mxu0 0.0
        %466 = vmatpush1.msra.mxu0 %v460
        %467 = vmatprep.subr.mxu0 0.0
        %468 = vmatpush1.msra.mxu0 0.0
        %469 = vmatprep.subr.mxu0 0.0
        %470 = vmatpush1.msra.mxu0 0.0
        %471 = vmatprep.subr.mxu0 0.0
        %472 = vmatpush1.msra.mxu0 0.0
        %473 = vmatprep.subr.mxu0 0.0
        %474 = vmatpush1.msra.mxu0 0.0
        %475 = vmatprep.subr.mxu0 0.0
        %476 = vmatpush1.msra.mxu0 0.0
        %477 = vmatprep.subr.mxu0 0.0
        %478 = vmatpush1.msra.mxu0 0.0
        %479 = vmatprep.subr.mxu0 0.0
        %480 = vmatpush1.msra.mxu0 0.0
        %481 = vmatprep.subr.mxu0 0.0
        %482 = vmatpush1.msra.mxu0 0.0
        %483 = vmatprep.subr.mxu0 0.0
        %484 = vmatpush1.msra.mxu0 0.0
        %485 = vmatprep.subr.mxu0 0.0
        %486 = vmatpush1.msra.mxu0 0.0
        %487 = vmatprep.subr.mxu0 0.0
        %488 = vmatpush1.msra.mxu0 0.0
        %489 = vmatprep.subr.mxu0 0.0
        %490 = vmatpush1.msra.mxu0 0.0
        %491 = vmatprep.subr.mxu0 0.0
        %492 = vmatpush1.msra.mxu0 0.0
        %493 = vmatprep.subr.mxu0 0.0
        %494 = vmatpush1.msra.mxu0 0.0
        %495 = vmatprep.subr.mxu0 0.0
        %496 = vmatpush1.msra.mxu0 0.0
        %497 = vmatprep.subr.mxu0 0.0
        %498 = vmatpush1.msra.mxu0 0.0
        %499 = vmatprep.subr.mxu0 0.0
        %500 = vmatpush1.msra.mxu0 0.0
        %501 = vmatprep.subr.mxu0 0.0
        %502 = vmatpush1.msra.mxu0 0.0
        %503 = vmatprep.subr.mxu0 0.0
        %504 = vmatpush1.msra.mxu0 0.0
        %505 = vmatprep.subr.mxu0 0.0
        %506 = vmatpush1.msra.mxu0 0.0
        %507 = vmatprep.subr.mxu0 0.0
        %508 = vmatpush1.msra.mxu0 0.0
        %509 = vmatprep.subr.mxu0 0.0
        %510 = vmatpush1.msra.mxu0 0.0
        %511 = vmatprep.subr.mxu0 0.0
        %512 = vmatpush1.msra.mxu0 0.0
        %513 = vmatprep.subr.mxu0 0.0
        %514 = vmatpush1.msra.mxu0 0.0
        %515 = vmatprep.subr.mxu0 0.0
        %516 = vmatpush1.msra.mxu0 0.0
        %517 = vmatprep.subr.mxu0 0.0
        %518 = vmatpush1.msra.mxu0 0.0
        %519 = vmatprep.subr.mxu0 0.0
        %520 = vmatpush1.msra.mxu0 0.0
        %521 = vmatprep.subr.mxu0 0.0
        %522 = vmatpush1.msra.mxu0 0.0
        %523 = vmatprep.subr.mxu0 0.0
        %524 = vmatpush1.msra.mxu0 0.0
        %525 = vmatprep.subr.mxu0 0.0
        %526 = vmatpush1.msra.mxu0 0.0
        %527 = vmatprep.subr.mxu0 0.0
        %528 = vmatpush1.msra.mxu0 0.0
        %529 = vmatprep.mubr.f32.mxu0 0.0
        %530 = vmatmul.mubr.f32.gmra.mrb[0].mxu0 %v463
        %v531 = vpop.f32.mrb[0].mxu0
        %v532 = vadd.f32 0.0, %v531
        %v533 = vpop.f32.mrb[0].mxu0
        %534 = vdwg.mxu0
        %535 = vrot.lane.b32.xlu0 %v366, 120
        %v536 = vpop.permute.xlu0 %535
        %537 = vrot.lane.b32.xlu0 %v366, 88
        %v538 = vpop.permute.xlu0 %537
        %v539 = vsel %vm372, %v536, 0
        %v541 = vsel %vm372, %v538, 0
        %543 = vmatprep.subr.mxu0 0.0
        %544 = vmatpush1.xpose.msra.mxu0 %v541
        %545 = vmatprep.subr.mxu0 0.0
        %546 = vmatpush1.xpose.msra.mxu0 0.0
        %547 = vmatprep.subr.mxu0 0.0
        %548 = vmatpush1.xpose.msra.mxu0 0.0
        %549 = vmatprep.subr.mxu0 0.0
        %550 = vmatpush1.xpose.msra.mxu0 0.0
        %551 = vmatprep.subr.mxu0 0.0
        %552 = vmatpush1.xpose.msra.mxu0 0.0
        %553 = vmatprep.subr.mxu0 0.0
        %554 = vmatpush1.xpose.msra.mxu0 0.0
        %555 = vmatprep.subr.mxu0 0.0
        %556 = vmatpush1.xpose.msra.mxu0 0.0
        %557 = vmatprep.subr.mxu0 0.0
        %558 = vmatpush1.xpose.msra.mxu0 0.0
        %559 = vmatprep.subr.mxu0 0.0
        %560 = vmatpush1.xpose.msra.mxu0 0.0
        %561 = vmatprep.subr.mxu0 0.0
        %562 = vmatpush1.xpose.msra.mxu0 0.0
        %563 = vmatprep.subr.mxu0 0.0
        %564 = vmatpush1.xpose.msra.mxu0 0.0
        %565 = vmatprep.subr.mxu0 0.0
        %566 = vmatpush1.xpose.msra.mxu0 0.0
        %567 = vmatprep.subr.mxu0 0.0
        %568 = vmatpush1.xpose.msra.mxu0 0.0
        %569 = vmatprep.subr.mxu0 0.0
        %570 = vmatpush1.xpose.msra.mxu0 0.0
        %571 = vmatprep.subr.mxu0 0.0
        %572 = vmatpush1.xpose.msra.mxu0 0.0
        %573 = vmatprep.subr.mxu0 0.0
        %574 = vmatpush1.xpose.msra.mxu0 0.0
        %575 = vmatprep.subr.mxu0 0.0
        %576 = vmatpush1.xpose.msra.mxu0 0.0
        %577 = vmatprep.subr.mxu0 0.0
        %578 = vmatpush1.xpose.msra.mxu0 0.0
        %579 = vmatprep.subr.mxu0 0.0
        %580 = vmatpush1.xpose.msra.mxu0 0.0
        %581 = vmatprep.subr.mxu0 0.0
        %582 = vmatpush1.xpose.msra.mxu0 0.0
        %583 = vmatprep.subr.mxu0 0.0
        %584 = vmatpush1.xpose.msra.mxu0 0.0
        %585 = vmatprep.subr.mxu0 0.0
        %586 = vmatpush1.xpose.msra.mxu0 0.0
        %587 = vmatprep.subr.mxu0 0.0
        %588 = vmatpush1.xpose.msra.mxu0 0.0
        %589 = vmatprep.subr.mxu0 0.0
        %590 = vmatpush1.xpose.msra.mxu0 0.0
        %591 = vmatprep.subr.mxu0 0.0
        %592 = vmatpush1.xpose.msra.mxu0 0.0
        %593 = vmatprep.subr.mxu0 0.0
        %594 = vmatpush1.xpose.msra.mxu0 0.0
        %595 = vmatprep.subr.mxu0 0.0
        %596 = vmatpush1.xpose.msra.mxu0 0.0
        %597 = vmatprep.subr.mxu0 0.0
        %598 = vmatpush1.xpose.msra.mxu0 0.0
        %599 = vmatprep.subr.mxu0 0.0
        %600 = vmatpush1.xpose.msra.mxu0 0.0
        %601 = vmatprep.subr.mxu0 0.0
        %602 = vmatpush1.xpose.msra.mxu0 0.0
        %603 = vmatprep.subr.mxu0 0.0
        %604 = vmatpush1.xpose.msra.mxu0 0.0
        %605 = vmatprep.subr.mxu0 0.0
        %606 = vmatpush1.xpose.msra.mxu0 0.0
        %607 = vmatprep.mubr.f32.mxu0 0.0
        %608 = vmatmul.mubr.f32.gmra.mrb[0].mxu0 %v539
        %v609 = vpop.f32.mrb[0].mxu0
        %v610 = vadd.f32 0.0, %v609
        %v611 = vpop.f32.mrb[0].mxu0
        %612 = vdwg.mxu0
        %v613 = vmul.f32 %v610, 0.35355338
        %v614 = vsel %vm372, %v613, -inf
        %615 = vmax.xlane.f32.xlu0 %v614
        %v616 = vpop.xlane.xlu0 %615
        %v617 = vsub.f32 %v613, %v616
        %v618 = vmul.f32 %v617, 1.442695
        %v619 = vpow.pop %v618
        %v620 = vsel %vm372, %v619, 0.0
        %621 = vadd.xlane.f32.xlu0 %v620
        %v622 = vpop.xlane.xlu0 %621
        %v623 = vrcp.pop %v622
        %v624 = vmul.f32 %v619, %v623
        %625 = vrot.lane.b32.xlu0 %v366, 56
        %v626 = vpop.permute.xlu0 %625
        %v629 = vsel %vm372, %v624, 0
        %631 = vmatprep.subr.mxu0 0.0
        %632 = vmatpush1.msra.mxu0 %v626
        %633 = vmatprep.subr.mxu0 0.0
        %634 = vmatpush1.msra.mxu0 0.0
        %635 = vmatprep.subr.mxu0 0.0
        %636 = vmatpush1.msra.mxu0 0.0
        %637 = vmatprep.subr.mxu0 0.0
        %638 = vmatpush1.msra.mxu0 0.0
        %639 = vmatprep.subr.mxu0 0.0
        %640 = vmatpush1.msra.mxu0 0.0
        %641 = vmatprep.subr.mxu0 0.0
        %642 = vmatpush1.msra.mxu0 0.0
        %643 = vmatprep.subr.mxu0 0.0
        %644 = vmatpush1.msra.mxu0 0.0
        %645 = vmatprep.subr.mxu0 0.0
        %646 = vmatpush1.msra.mxu0 0.0
        %647 = vmatprep.subr.mxu0 0.0
        %648 = vmatpush1.msra.mxu0 0.0
        %649 = vmatprep.subr.mxu0 0.0
        %650 = vmatpush1.msra.mxu0 0.0
        %651 = vmatprep.subr.mxu0 0.0
        %652 = vmatpush1.msra.mxu0 0.0
        %653 = vmatprep.subr.mxu0 0.0
        %654 = vmatpush1.msra.mxu0 0.0
        %655 = vmatprep.subr.mxu0 0.0
        %656 = vmatpush1.msra.mxu0 0.0
        %657 = vmatprep.subr.mxu0 0.0
        %658 = vmatpush1.msra.mxu0 0.0
        %659 = vmatprep.subr.mxu0 0.0
        %660 = vmatpush1.msra.mxu0 0.0
        %661 = vmatprep.subr.mxu0 0.0
        %662 = vmatpush1.msra.mxu0 0.0
        %663 = vmatprep.subr.mxu0 0.0
        %664 = vmatpush1.msra.mxu0 0.0
        %665 = vmatprep.subr.mxu0 0.0
        %666 = vmatpush1.msra.mxu0 0.0
        %667 = vmatprep.subr.mxu0 0.0
        %668 = vmatpush1.msra.mxu0 0.0
        %669 = vmatprep.subr.mxu0 0.0
        %670 = vmatpush1.msra.mxu0 0.0
        %671 = vmatprep.subr.mxu0 0.0
        %672 = vmatpush1.msra.mxu0 0.0
        %673 = vmatprep.subr.mxu0 0.0
        %674 = vmatpush1.msra.mxu0 0.0
        %675 = vmatprep.subr.mxu0 0.0
        %676 = vmatpush1.msra.mxu0 0.0
        %677 = vmatprep.subr.mxu0 0.0
        %678 = vmatpush1.msra.mxu0 0.0
        %679 = vmatprep.subr.mxu0 0.0
        %680 = vmatpush1.msra.mxu0 0.0
        %681 = vmatprep.subr.mxu0 0.0
        %682 = vmatpush1.msra.mxu0 0.0
        %683 = vmatprep.subr.mxu0 0.0
        %684 = vmatpush1.msra.mxu0 0.0
        %685 = vmatprep.subr.mxu0 0.0
        %686 = vmatpush1.msra.mxu0 0.0
        %687 = vmatprep.subr.mxu0 0.0
        %688 = vmatpush1.msra.mxu0 0.0
        %689 = vmatprep.subr.mxu0 0.0
        %690 = vmatpush1.msra.mxu0 0.0
        %691 = vmatprep.subr.mxu0 0.0
        %692 = vmatpush1.msra.mxu0 0.0
        %693 = vmatprep.subr.mxu0 0.0
        %694 = vmatpush1.msra.mxu0 0.0
        %695 = vmatprep.mubr.f32.mxu0 0.0
        %696 = vmatmul.mubr.f32.gmra.mrb[0].mxu0 %v629
        %v697 = vpop.f32.mrb[0].mxu0
        %v698 = vadd.f32 0.0, %v697
        %v699 = vpop.f32.mrb[0].mxu0
        %700 = vdwg.mxu0
        %701 = vrot.lane.b32.xlu0 %v366, 112
        %v702 = vpop.permute.xlu0 %701
        %703 = vrot.lane.b32.xlu0 %v366, 80
        %v704 = vpop.permute.xlu0 %703
        %v705 = vsel %vm372, %v702, 0
        %v707 = vsel %vm372, %v704, 0
        %709 = vmatprep.subr.mxu0 0.0
        %710 = vmatpush1.xpose.msra.mxu0 %v707
        %711 = vmatprep.subr.mxu0 0.0
        %712 = vmatpush1.xpose.msra.mxu0 0.0
        %713 = vmatprep.subr.mxu0 0.0
        %714 = vmatpush1.xpose.msra.mxu0 0.0
        %715 = vmatprep.subr.mxu0 0.0
        %716 = vmatpush1.xpose.msra.mxu0 0.0
        %717 = vmatprep.subr.mxu0 0.0
        %718 = vmatpush1.xpose.msra.mxu0 0.0
        %719 = vmatprep.subr.mxu0 0.0
        %720 = vmatpush1.xpose.msra.mxu0 0.0
        %721 = vmatprep.subr.mxu0 0.0
        %722 = vmatpush1.xpose.msra.mxu0 0.0
        %723 = vmatprep.subr.mxu0 0.0
        %724 = vmatpush1.xpose.msra.mxu0 0.0
        %725 = vmatprep.subr.mxu0 0.0
        %726 = vmatpush1.xpose.msra.mxu0 0.0
        %727 = vmatprep.subr.mxu0 0.0
        %728 = vmatpush1.xpose.msra.mxu0 0.0
        %729 = vmatprep.subr.mxu0 0.0
        %730 = vmatpush1.xpose.msra.mxu0 0.0
        %731 = vmatprep.subr.mxu0 0.0
        %732 = vmatpush1.xpose.msra.mxu0 0.0
        %733 = vmatprep.subr.mxu0 0.0
        %734 = vmatpush1.xpose.msra.mxu0 0.0
        %735 = vmatprep.subr.mxu0 0.0
        %736 = vmatpush1.xpose.msra.mxu0 0.0
        %737 = vmatprep.subr.mxu0 0.0
        %738 = vmatpush1.xpose.msra.mxu0 0.0
        %739 = vmatprep.subr.mxu0 0.0
        %740 = vmatpush1.xpose.msra.mxu0 0.0
        %741 = vmatprep.subr.mxu0 0.0
        %742 = vmatpush1.xpose.msra.mxu0 0.0
        %743 = vmatprep.subr.mxu0 0.0
        %744 = vmatpush1.xpose.msra.mxu0 0.0
        %745 = vmatprep.subr.mxu0 0.0
        %746 = vmatpush1.xpose.msra.mxu0 0.0
        %747 = vmatprep.subr.mxu0 0.0
        %748 = vmatpush1.xpose.msra.mxu0 0.0
        %749 = vmatprep.subr.mxu0 0.0
        %750 = vmatpush1.xpose.msra.mxu0 0.0
        %751 = vmatprep.subr.mxu0 0.0
        %752 = vmatpush1.xpose.msra.mxu0 0.0
        %753 = vmatprep.subr.mxu0 0.0
        %754 = vmatpush1.xpose.msra.mxu0 0.0
        %755 = vmatprep.subr.mxu0 0.0
        %756 = vmatpush1.xpose.msra.mxu0 0.0
        %757 = vmatprep.subr.mxu0 0.0
        %758 = vmatpush1.xpose.msra.mxu0 0.0
        %759 = vmatprep.subr.mxu0 0.0
        %760 = vmatpush1.xpose.msra.mxu0 0.0
        %761 = vmatprep.subr.mxu0 0.0
        %762 = vmatpush1.xpose.msra.mxu0 0.0
        %763 = vmatprep.subr.mxu0 0.0
        %764 = vmatpush1.xpose.msra.mxu0 0.0
        %765 = vmatprep.subr.mxu0 0.0
        %766 = vmatpush1.xpose.msra.mxu0 0.0
        %767 = vmatprep.subr.mxu0 0.0
        %768 = vmatpush1.xpose.msra.mxu0 0.0
        %769 = vmatprep.subr.mxu0 0.0
        %770 = vmatpush1.xpose.msra.mxu0 0.0
        %771 = vmatprep.subr.mxu0 0.0
        %772 = vmatpush1.xpose.msra.mxu0 0.0
        %773 = vmatprep.mubr.f32.mxu0 0.0
        %774 = vmatmul.mubr.f32.gmra.mrb[0].mxu0 %v705
        %v775 = vpop.f32.mrb[0].mxu0
        %v776 = vadd.f32 0.0, %v775
        %v777 = vpop.f32.mrb[0].mxu0
        %778 = vdwg.mxu0
        %v779 = vmul.f32 %v776, 0.35355338
        %v780 = vsel %vm372, %v779, -inf
        %781 = vmax.xlane.f32.xlu0 %v780
        %v782 = vpop.xlane.xlu0 %781
        %v783 = vsub.f32 %v779, %v782
        %v784 = vmul.f32 %v783, 1.442695
        %v785 = vpow.pop %v784
        %v786 = vsel %vm372, %v785, 0.0
        %787 = vadd.xlane.f32.xlu0 %v786
        %v788 = vpop.xlane.xlu0 %787
        %v789 = vrcp.pop %v788
        %v790 = vmul.f32 %v785, %v789
        %791 = vrot.lane.b32.xlu0 %v366, 48
        %v792 = vpop.permute.xlu0 %791
        %v795 = vsel %vm372, %v790, 0
        %797 = vmatprep.subr.mxu0 0.0
        %798 = vmatpush1.msra.mxu0 %v792
        %799 = vmatprep.subr.mxu0 0.0
        %800 = vmatpush1.msra.mxu0 0.0
        %801 = vmatprep.subr.mxu0 0.0
        %802 = vmatpush1.msra.mxu0 0.0
        %803 = vmatprep.subr.mxu0 0.0
        %804 = vmatpush1.msra.mxu0 0.0
        %805 = vmatprep.subr.mxu0 0.0
        %806 = vmatpush1.msra.mxu0 0.0
        %807 = vmatprep.subr.mxu0 0.0
        %808 = vmatpush1.msra.mxu0 0.0
        %809 = vmatprep.subr.mxu0 0.0
        %810 = vmatpush1.msra.mxu0 0.0
        %811 = vmatprep.subr.mxu0 0.0
        %812 = vmatpush1.msra.mxu0 0.0
        %813 = vmatprep.subr.mxu0 0.0
        %814 = vmatpush1.msra.mxu0 0.0
        %815 = vmatprep.subr.mxu0 0.0
        %816 = vmatpush1.msra.mxu0 0.0
        %817 = vmatprep.subr.mxu0 0.0
        %818 = vmatpush1.msra.mxu0 0.0
        %819 = vmatprep.subr.mxu0 0.0
        %820 = vmatpush1.msra.mxu0 0.0
        %821 = vmatprep.subr.mxu0 0.0
        %822 = vmatpush1.msra.mxu0 0.0
        %823 = vmatprep.subr.mxu0 0.0
        %824 = vmatpush1.msra.mxu0 0.0
        %825 = vmatprep.subr.mxu0 0.0
        %826 = vmatpush1.msra.mxu0 0.0
        %827 = vmatprep.subr.mxu0 0.0
        %828 = vmatpush1.msra.mxu0 0.0
        %829 = vmatprep.subr.mxu0 0.0
        %830 = vmatpush1.msra.mxu0 0.0
        %831 = vmatprep.subr.mxu0 0.0
        %832 = vmatpush1.msra.mxu0 0.0
        %833 = vmatprep.subr.mxu0 0.0
        %834 = vmatpush1.msra.mxu0 0.0
        %835 = vmatprep.subr.mxu0 0.0
        %836 = vmatpush1.msra.mxu0 0.0
        %837 = vmatprep.subr.mxu0 0.0
        %838 = vmatpush1.msra.mxu0 0.0
        %839 = vmatprep.subr.mxu0 0.0
        %840 = vmatpush1.msra.mxu0 0.0
        %841 = vmatprep.subr.mxu0 0.0
        %842 = vmatpush1.msra.mxu0 0.0
        %843 = vmatprep.subr.mxu0 0.0
        %844 = vmatpush1.msra.mxu0 0.0
        %845 = vmatprep.subr.mxu0 0.0
        %846 = vmatpush1.msra.mxu0 0.0
        %847 = vmatprep.subr.mxu0 0.0
        %848 = vmatpush1.msra.mxu0 0.0
        %849 = vmatprep.subr.mxu0 0.0
        %850 = vmatpush1.msra.mxu0 0.0
        %851 = vmatprep.subr.mxu0 0.0
        %852 = vmatpush1.msra.mxu0 0.0
        %853 = vmatprep.subr.mxu0 0.0
        %854 = vmatpush1.msra.mxu0 0.0
        %855 = vmatprep.subr.mxu0 0.0
        %856 = vmatpush1.msra.mxu0 0.0
        %857 = vmatprep.subr.mxu0 0.0
        %858 = vmatpush1.msra.mxu0 0.0
        %859 = vmatprep.subr.mxu0 0.0
        %860 = vmatpush1.msra.mxu0 0.0
        %861 = vmatprep.mubr.f32.mxu0 0.0
        %862 = vmatmul.mubr.f32.gmra.mrb[0].mxu0 %v795
        %v863 = vpop.f32.mrb[0].mxu0
        %v864 = vadd.f32 0.0, %v863
        %v865 = vpop.f32.mrb[0].mxu0
        %866 = vdwg.mxu0
        %867 = vrot.lane.b32.xlu0 %v366, 104
        %v868 = vpop.permute.xlu0 %867
        %869 = vrot.lane.b32.xlu0 %v366, 72
        %v870 = vpop.permute.xlu0 %869
        %v871 = vsel %vm372, %v868, 0
        %v873 = vsel %vm372, %v870, 0
        %875 = vmatprep.subr.mxu0 0.0
        %876 = vmatpush1.xpose.msra.mxu0 %v873
        %877 = vmatprep.subr.mxu0 0.0
        %878 = vmatpush1.xpose.msra.mxu0 0.0
        %879 = vmatprep.subr.mxu0 0.0
        %880 = vmatpush1.xpose.msra.mxu0 0.0
        %881 = vmatprep.subr.mxu0 0.0
        %882 = vmatpush1.xpose.msra.mxu0 0.0
        %883 = vmatprep.subr.mxu0 0.0
        %884 = vmatpush1.xpose.msra.mxu0 0.0
        %885 = vmatprep.subr.mxu0 0.0
        %886 = vmatpush1.xpose.msra.mxu0 0.0
        %887 = vmatprep.subr.mxu0 0.0
        %888 = vmatpush1.xpose.msra.mxu0 0.0
        %889 = vmatprep.subr.mxu0 0.0
        %890 = vmatpush1.xpose.msra.mxu0 0.0
        %891 = vmatprep.subr.mxu0 0.0
        %892 = vmatpush1.xpose.msra.mxu0 0.0
        %893 = vmatprep.subr.mxu0 0.0
        %894 = vmatpush1.xpose.msra.mxu0 0.0
        %895 = vmatprep.subr.mxu0 0.0
        %896 = vmatpush1.xpose.msra.mxu0 0.0
        %897 = vmatprep.subr.mxu0 0.0
        %898 = vmatpush1.xpose.msra.mxu0 0.0
        %899 = vmatprep.subr.mxu0 0.0
        %900 = vmatpush1.xpose.msra.mxu0 0.0
        %901 = vmatprep.subr.mxu0 0.0
        %902 = vmatpush1.xpose.msra.mxu0 0.0
        %903 = vmatprep.subr.mxu0 0.0
        %904 = vmatpush1.xpose.msra.mxu0 0.0
        %905 = vmatprep.subr.mxu0 0.0
        %906 = vmatpush1.xpose.msra.mxu0 0.0
        %907 = vmatprep.subr.mxu0 0.0
        %908 = vmatpush1.xpose.msra.mxu0 0.0
        %909 = vmatprep.subr.mxu0 0.0
        %910 = vmatpush1.xpose.msra.mxu0 0.0
        %911 = vmatprep.subr.mxu0 0.0
        %912 = vmatpush1.xpose.msra.mxu0 0.0
        %913 = vmatprep.subr.mxu0 0.0
        %914 = vmatpush1.xpose.msra.mxu0 0.0
        %915 = vmatprep.subr.mxu0 0.0
        %916 = vmatpush1.xpose.msra.mxu0 0.0
        %917 = vmatprep.subr.mxu0 0.0
        %918 = vmatpush1.xpose.msra.mxu0 0.0
        %919 = vmatprep.subr.mxu0 0.0
        %920 = vmatpush1.xpose.msra.mxu0 0.0
        %921 = vmatprep.subr.mxu0 0.0
        %922 = vmatpush1.xpose.msra.mxu0 0.0
        %923 = vmatprep.subr.mxu0 0.0
        %924 = vmatpush1.xpose.msra.mxu0 0.0
        %925 = vmatprep.subr.mxu0 0.0
        %926 = vmatpush1.xpose.msra.mxu0 0.0
        %927 = vmatprep.subr.mxu0 0.0
        %928 = vmatpush1.xpose.msra.mxu0 0.0
        %929 = vmatprep.subr.mxu0 0.0
        %930 = vmatpush1.xpose.msra.mxu0 0.0
        %931 = vmatprep.subr.mxu0 0.0
        %932 = vmatpush1.xpose.msra.mxu0 0.0
        %933 = vmatprep.subr.mxu0 0.0
        %934 = vmatpush1.xpose.msra.mxu0 0.0
        %935 = vmatprep.subr.mxu0 0.0
        %936 = vmatpush1.xpose.msra.mxu0 0.0
        %937 = vmatprep.subr.mxu0 0.0
        %938 = vmatpush1.xpose.msra.mxu0 0.0
        %939 = vmatprep.mubr.f32.mxu0 0.0
        %940 = vmatmul.mubr.f32.gmra.mrb[0].mxu0 %v871
        %v941 = vpop.f32.mrb[0].mxu0
        %v942 = vadd.f32 0.0, %v941
        %v943 = vpop.f32.mrb[0].mxu0
        %944 = vdwg.mxu0
        %v945 = vmul.f32 %v942, 0.35355338
        %v946 = vsel %vm372, %v945, -inf
        %947 = vmax.xlane.f32.xlu0 %v946
        %v948 = vpop.xlane.xlu0 %947
        %v949 = vsub.f32 %v945, %v948
        %v950 = vmul.f32 %v949, 1.442695
        %v951 = vpow.pop %v950
        %v952 = vsel %vm372, %v951, 0.0
        %953 = vadd.xlane.f32.xlu0 %v952
        %v954 = vpop.xlane.xlu0 %953
        %v955 = vrcp.pop %v954
        %v956 = vmul.f32 %v951, %v955
        %957 = vrot.lane.b32.xlu0 %v366, 40
        %v958 = vpop.permute.xlu0 %957
        %v961 = vsel %vm372, %v956, 0
        %963 = vmatprep.subr.mxu0 0.0
        %964 = vmatpush1.msra.mxu0 %v958
        %965 = vmatprep.subr.mxu0 0.0
        %966 = vmatpush1.msra.mxu0 0.0
        %967 = vmatprep.subr.mxu0 0.0
        %968 = vmatpush1.msra.mxu0 0.0
        %969 = vmatprep.subr.mxu0 0.0
        %970 = vmatpush1.msra.mxu0 0.0
        %971 = vmatprep.subr.mxu0 0.0
        %972 = vmatpush1.msra.mxu0 0.0
        %973 = vmatprep.subr.mxu0 0.0
        %974 = vmatpush1.msra.mxu0 0.0
        %975 = vmatprep.subr.mxu0 0.0
        %976 = vmatpush1.msra.mxu0 0.0
        %977 = vmatprep.subr.mxu0 0.0
        %978 = vmatpush1.msra.mxu0 0.0
        %979 = vmatprep.subr.mxu0 0.0
        %980 = vmatpush1.msra.mxu0 0.0
        %981 = vmatprep.subr.mxu0 0.0
        %982 = vmatpush1.msra.mxu0 0.0
        %983 = vmatprep.subr.mxu0 0.0
        %984 = vmatpush1.msra.mxu0 0.0
        %985 = vmatprep.subr.mxu0 0.0
        %986 = vmatpush1.msra.mxu0 0.0
        %987 = vmatprep.subr.mxu0 0.0
        %988 = vmatpush1.msra.mxu0 0.0
        %989 = vmatprep.subr.mxu0 0.0
        %990 = vmatpush1.msra.mxu0 0.0
        %991 = vmatprep.subr.mxu0 0.0
        %992 = vmatpush1.msra.mxu0 0.0
        %993 = vmatprep.subr.mxu0 0.0
        %994 = vmatpush1.msra.mxu0 0.0
        %995 = vmatprep.subr.mxu0 0.0
        %996 = vmatpush1.msra.mxu0 0.0
        %997 = vmatprep.subr.mxu0 0.0
        %998 = vmatpush1.msra.mxu0 0.0
        %999 = vmatprep.subr.mxu0 0.0
        %1000 = vmatpush1.msra.mxu0 0.0
        %1001 = vmatprep.subr.mxu0 0.0
        %1002 = vmatpush1.msra.mxu0 0.0
        %1003 = vmatprep.subr.mxu0 0.0
        %1004 = vmatpush1.msra.mxu0 0.0
        %1005 = vmatprep.subr.mxu0 0.0
        %1006 = vmatpush1.msra.mxu0 0.0
        %1007 = vmatprep.subr.mxu0 0.0
        %1008 = vmatpush1.msra.mxu0 0.0
        %1009 = vmatprep.subr.mxu0 0.0
        %1010 = vmatpush1.msra.mxu0 0.0
        %1011 = vmatprep.subr.mxu0 0.0
        %1012 = vmatpush1.msra.mxu0 0.0
        %1013 = vmatprep.subr.mxu0 0.0
        %1014 = vmatpush1.msra.mxu0 0.0
        %1015 = vmatprep.subr.mxu0 0.0
        %1016 = vmatpush1.msra.mxu0 0.0
        %1017 = vmatprep.subr.mxu0 0.0
        %1018 = vmatpush1.msra.mxu0 0.0
        %1019 = vmatprep.subr.mxu0 0.0
        %1020 = vmatpush1.msra.mxu0 0.0
        %1021 = vmatprep.subr.mxu0 0.0
        %1022 = vmatpush1.msra.mxu0 0.0
        %1023 = vmatprep.subr.mxu0 0.0
        %1024 = vmatpush1.msra.mxu0 0.0
        %1025 = vmatprep.subr.mxu0 0.0
        %1026 = vmatpush1.msra.mxu0 0.0
        %1027 = vmatprep.mubr.f32.mxu0 0.0
        %1028 = vmatmul.mubr.f32.gmra.mrb[0].mxu0 %v961
        %v1029 = vpop.f32.mrb[0].mxu0
        %v1030 = vadd.f32 0.0, %v1029
        %v1031 = vpop.f32.mrb[0].mxu0
        %1032 = vdwg.mxu0
        %1034 = vrot.lane.b32.xlu0 %v698, 8
        %v1035 = vpop.permute.xlu0 %1034
        %1038 = vrot.lane.b32.xlu0 %v864, 16
        %v1039 = vpop.permute.xlu0 %1038
        %1042 = vrot.lane.b32.xlu0 %v1030, 24
        %v1043 = vpop.permute.xlu0 %1042
        %v1045 = vsel %vm372, %v532, %v1035
        %vm1046 = vcmask 130048
        %v1047 = vsel %vm1046, %v1045, %v1039
        %vm1048 = vcmask 195584
        %v1049 = vsel %vm1048, %v1047, %v1043
        %v1050 = vld [vmem:[#allocation7] sm:$0xff]
        %v1051 = vld [vmem:[#allocation7 + $0x8] sm:$0xff]
        %v1052 = vld [vmem:[#allocation7 + $0x10] sm:$0xff]
        %v1053 = vld [vmem:[#allocation7 + $0x18] sm:$0xff]
        %v1054 = vld [vmem:[%s4] sm:$0x1]
        %v1056 = vlaneseq
        %v1057 = vshrl.u32 %v1056, 7
        %v1058 = vsub.s32 0, %v1057
        %v1059 = vrot.slane %v1054, %v1058
        %v1062 = vsel %vm270, %v1049, 0
        %1064 = vmatprep.subr.mxu0 0.0
        %1065 = vmatpush1.msra.mxu0 %v1050
        %1066 = vmatprep.subr.mxu0 0.0
        %1067 = vmatpush1.msra.mxu0 %v1051
        %1068 = vmatprep.subr.mxu0 0.0
        %1069 = vmatpush1.msra.mxu0 %v1052
        %1070 = vmatprep.subr.mxu0 0.0
        %1071 = vmatpush1.msra.mxu0 %v1053
        %1072 = vmatprep.subr.mxu0 0.0
        %1073 = vmatpush1.msra.mxu0 0.0
        %1074 = vmatprep.subr.mxu0 0.0
        %1075 = vmatpush1.msra.mxu0 0.0
        %1076 = vmatprep.subr.mxu0 0.0
        %1077 = vmatpush1.msra.mxu0 0.0
        %1078 = vmatprep.subr.mxu0 0.0
        %1079 = vmatpush1.msra.mxu0 0.0
        %1080 = vmatprep.subr.mxu0 0.0
        %1081 = vmatpush1.msra.mxu0 0.0
        %1082 = vmatprep.subr.mxu0 0.0
        %1083 = vmatpush1.msra.mxu0 0.0
        %1084 = vmatprep.subr.mxu0 0.0
        %1085 = vmatpush1.msra.mxu0 0.0
        %1086 = vmatprep.subr.mxu0 0.0
        %1087 = vmatpush1.msra.mxu0 0.0
        %1088 = vmatprep.subr.mxu0 0.0
        %1089 = vmatpush1.msra.mxu0 0.0
        %1090 = vmatprep.subr.mxu0 0.0
        %1091 = vmatpush1.msra.mxu0 0.0
        %1092 = vmatprep.subr.mxu0 0.0
        %1093 = vmatpush1.msra.mxu0 0.0
        %1094 = vmatprep.subr.mxu0 0.0
        %1095 = vmatpush1.msra.mxu0 0.0
        %1096 = vmatprep.subr.mxu0 0.0
        %1097 = vmatpush1.msra.mxu0 0.0
        %1098 = vmatprep.subr.mxu0 0.0
        %1099 = vmatpush1.msra.mxu0 0.0
        %1100 = vmatprep.subr.mxu0 0.0
        %1101 = vmatpush1.msra.mxu0 0.0
        %1102 = vmatprep.subr.mxu0 0.0
        %1103 = vmatpush1.msra.mxu0 0.0
        %1104 = vmatprep.subr.mxu0 0.0
        %1105 = vmatpush1.msra.mxu0 0.0
        %1106 = vmatprep.subr.mxu0 0.0
        %1107 = vmatpush1.msra.mxu0 0.0
        %1108 = vmatprep.subr.mxu0 0.0
        %1109 = vmatpush1.msra.mxu0 0.0
        %1110 = vmatprep.subr.mxu0 0.0
        %1111 = vmatpush1.msra.mxu0 0.0
        %1112 = vmatprep.subr.mxu0 0.0
        %1113 = vmatpush1.msra.mxu0 0.0
        %1114 = vmatprep.subr.mxu0 0.0
        %1115 = vmatpush1.msra.mxu0 0.0
        %1116 = vmatprep.subr.mxu0 0.0
        %1117 = vmatpush1.msra.mxu0 0.0
        %1118 = vmatprep.subr.mxu0 0.0
        %1119 = vmatpush1.msra.mxu0 0.0
        %1120 = vmatprep.subr.mxu0 0.0
        %1121 = vmatpush1.msra.mxu0 0.0
        %1122 = vmatprep.subr.mxu0 0.0
        %1123 = vmatpush1.msra.mxu0 0.0
        %1124 = vmatprep.subr.mxu0 0.0
        %1125 = vmatpush1.msra.mxu0 0.0
        %1126 = vmatprep.subr.mxu0 0.0
        %1127 = vmatpush1.msra.mxu0 0.0
        %1128 = vmatprep.mubr.f32.mxu0 0.0
        %1129 = vmatmul.mubr.f32.gmra.mrb[0].mxu0 %v1062
        %v1130 = vpop.f32.mrb[0].mxu0
        %v1131 = vadd.f32 %v1059, %v1130
        %v1132 = vpop.f32.mrb[0].mxu0
        %1133 = vdwg.mxu0
        %v1134 = vadd.f32 %v269, %v1131
        %1135 = vst.msk [vmem:[%s268] sm:$0xff] %vm270, %v1134
        %s1136 = sand.u32 %s141, 1
        %s1137 = scalar_lea.sflag [#allocation4], %s1136
        %s1138 = sand.u32 %s141, 1
        %s1139 = smul.addr %s1138, 8
        %s1140 = scalar_lea.vmem [#allocation8], %s1139
        // Predicated region
        $region53: #{tpu_custom_call.1} parent=39 // pred_check
          %p1141 = pneg %p151
        $region54: #{tpu_custom_call.1} parent=39 // pred_check_branch
          %1143 = sbr.rel (%p1141) target = $region56
        $region55: #{tpu_custom_call.1} parent=39 // pred_region
          %s1145 = ssub.s32 128, 128
          %1146 = vsyncadd %s1137, %s1145
          %s1147 = smul.addr %s23, 128
          %s1148 = scalar_lea.hbm %s5, %s1147
          %s1150 = sshll.u32 %s1140, 4
          %s1151 = int_to_ptr.vmem [resolvable:$true] %s1150
          %1153 = dma.vmem_to_hbm [thread:$0]  %s1151, 128, %s1148, %s1137
        $region56: #{tpu_custom_call.1} parent=39 // pred_fallthru
          _
      $region40: #{tpu_custom_call.1} parent=5 // pred_fallthru
        _
      %p1154 = scmp.le.s32.totalorder 2, %s18
      // Predicated region
      $region57: #{tpu_custom_call.1} parent=5 // pred_check
        %p1155 = pneg %p1154
      $region58: #{tpu_custom_call.1} parent=5 // pred_check_branch
        %1157 = sbr.rel (%p1155) target = $region60
      $region59: #{tpu_custom_call.1} parent=5 // pred_region
        %s1158 = ssub.s32 %s18, 2
        // Predicated region
        $region61: #{tpu_custom_call.1} parent=59 // pred_check
          %p1159 = pneg %p157
        $region62: #{tpu_custom_call.1} parent=59 // pred_check_branch
          %1161 = sbr.rel (%p1159) target = $region64
        $region63: #{tpu_custom_call.1} parent=59 // pred_region
          %s1162 = sand.u32 %s142, 1
          %s1163 = scalar_lea.sflag [#allocation4], %s1162
          %s1164 = sand.u32 %s142, 1
          %s1165 = smul.addr %s1164, 8
          %s1166 = scalar_lea.vmem [#allocation8], %s1165
          %1167 = dma.done %s1163, 128
        $region64: #{tpu_custom_call.1} parent=59 // pred_fallthru
          _
      $region60: #{tpu_custom_call.1} parent=5 // pred_fallthru
        _
    $region6: #{tpu_custom_call.1} parent=1 // loop_footer
      %s22 = sadd.s32 1, %s18
    $region7: #{tpu_custom_call.1} parent=1 // loop_footer_branch
      %17 = sbr.rel target = $region3
    $region8: #{tpu_custom_call.1} parent=1 // loop_exit
      _
    %1168 = vsyncpa [#allocation3], 1
    %s1169 = scalar_lea.sflag [#allocation3], 1
    %1170 = vsyncpa %s1169, 1
    %1171 = vsyncpa [#allocation6], 1
    %1172 = vsyncpa [#allocation4], 1
    %s1173 = scalar_lea.sflag [#allocation4], 1
    %1174 = vsyncpa %s1173, 1

</llo_original>
